<compile_context>
chip_gen: v5e
topology: v5e:2x2
jax: 0.10.0
libtpu: 0.0.40
codegen_flags: <defaults>
</compile_context>

<pallas_src>
import jax
import jax.numpy as jnp
from jax.experimental import pallas as pl
from jax.experimental.pallas import tpu as pltpu


def _round_up(x, m):
    return (x + m - 1) // m * m


def _sigmoid(z):
    # Exact logistic via tanh: a single EUP push per element.
    return 0.5 * jnp.tanh(0.5 * z) + 0.5


# ----------------------------- Pallas kernels ------------------------------

def _conv_pool_kernel(w_ref, b_ref, p_ref, o_ref):
    """Fused conv-as-matmul + bias + sigmoid + 2x2 average pool.

    w_ref: (Cp, CKKp)   bf16  conv weights (resident across the grid)
    b_ref: (Cp, 1)      f32   bias column (resident)
    p_ref: (CKKp, 4*TN) bf16  im2col patches; lanes [t*TN,(t+1)*TN) = pool tap t
    o_ref: (Cp, TN)     f32   pooled, activated output (lane-dense)
    """
    tn = o_ref.shape[1]
    # One wide MXU matmul covering all 4 pool taps (amortizes push/drain).
    z = jnp.dot(w_ref[...], p_ref[...], preferred_element_type=jnp.float32)
    z = z + b_ref[...]                        # single bias broadcast per step
    s = _sigmoid(z)                           # sigmoid BEFORE the pool
    # 2x2 average pool = mean of four static, 128-aligned lane slices.
    o_ref[...] = 0.25 * (s[:, 0 * tn:1 * tn] + s[:, 1 * tn:2 * tn]
                         + s[:, 2 * tn:3 * tn] + s[:, 3 * tn:4 * tn])


def _fc_fused_kernel(x_ref, w1_ref, b1_ref, w2_ref, b2_ref, w3_ref, b3_ref,
                     o_ref):
    """fc1+sigmoid -> fc2+sigmoid -> fc3; activations stay in VMEM throughout.

    Weight refs are pre-cast bf16; biases f32; x block is one batch tile.
    """
    def mm(a, w_ref_):
        return jnp.dot(a.astype(jnp.bfloat16), w_ref_[...],
                       preferred_element_type=jnp.float32)
    h = _sigmoid(mm(x_ref[...], w1_ref) + b1_ref[...])
    h = _sigmoid(mm(h, w2_ref) + b2_ref[...])
    o_ref[...] = mm(h, w3_ref) + b3_ref[...]


# ----------------------------- Pallas wrappers -----------------------------

def _im2col_pool_taps(x_cnhw, k, ckkp, tn):
    """x: (C, N, H, W) f32 -> bf16 slab (CKKp, 4*NPAD), tap-blocked per lane tile.

    For lane tile i, lanes [i*4*TN + t*TN, i*4*TN + (t+1)*TN) hold pool tap t
    (the (dh,dw) in {0,1}^2 offset inside each 2x2 pool window) for pooled
    pixels [i*TN, (i+1)*TN).  Feature order inside C*k*k is (cin, kh, kw),
    matching PyTorch's w.reshape(Cout, Cin*k*k); column order is (n, hp, wp).
    """
    c, n, h, w = x_cnhw.shape
    ho, wo = h - k + 1, w - k + 1
    hp, wp = ho // 2, wo // 2
    nbig = n * hp * wp
    npad = _round_up(nbig, tn)
    cols = [x_cnhw[:, :, dh:dh + ho, dw:dw + wo]
            for dh in range(k) for dw in range(k)]
    p = jnp.stack(cols, axis=1)                    # (C, k*k, N, Ho, Wo)
    p = p.reshape(c, k * k, n, hp, 2, wp, 2)
    p = p.transpose(4, 6, 0, 1, 2, 3, 5)           # (2, 2, C, k*k, N, Hp, Wp)
    p = p.reshape(4, c * k * k, nbig).astype(jnp.bfloat16)   # bf16 stream
    p = jnp.pad(p, ((0, 0), (0, ckkp - c * k * k), (0, npad - nbig)))
    # Interleave taps at TN granularity along lanes: tile i = [tap0|tap1|tap2|tap3].
    p = p.reshape(4, ckkp, npad // tn, tn).transpose(1, 2, 0, 3)
    return p.reshape(ckkp, 4 * npad), (n, hp, wp, nbig, npad)


def conv_sigmoid_pool(x_cnhw, wmat, bcol, *, cout, k, tn_target=1024):
    """Conv2d(k, valid) + Sigmoid + AvgPool2d(2,2) in one Pallas call.

    x_cnhw: (C, N, H, W) f32 (spatial already zero-padded for the conv).
    wmat: (Cp, CKKp) bf16 prepared weights; bcol: (Cp, 1) f32 bias.
    Returns the pooled activation, channel-major: (cout, N, Hp, Wp) f32.
    """
    cp, ckkp = wmat.shape
    c, n, h, w = x_cnhw.shape
    hp, wp = (h - k + 1) // 2, (w - k + 1) // 2
    nbig = n * hp * wp
    tn = min(tn_target, _round_up(nbig, 128))      # pooled pixels per grid step
    patches, (_, _, _, nbig, npad) = _im2col_pool_taps(x_cnhw, k, ckkp, tn)
    out = pl.pallas_call(
        _conv_pool_kernel,
        out_shape=jax.ShapeDtypeStruct((cp, npad), jnp.float32),
        grid=(npad // tn,),
        in_specs=[
            pl.BlockSpec((cp, ckkp), lambda i: (0, 0)),        # weights resident
            pl.BlockSpec((cp, 1), lambda i: (0, 0)),           # bias resident
            pl.BlockSpec((ckkp, 4 * tn), lambda i: (0, i)),    # streamed patches
        ],
        out_specs=pl.BlockSpec((cp, tn), lambda i: (0, i)),
        # Per-step VMEM: 2x (CKKp x 4TN bf16) patch bufs + 2x (Cp x TN f32) out
        # bufs + weights + (Cp x 4TN f32) pre-pool intermediate -> a few MiB;
        # fits v5e's 16 MiB scoped default and v7x's 64 MiB physical VMEM.
        compiler_params=pltpu.CompilerParams(
            dimension_semantics=("parallel",),
            vmem_limit_bytes=32 * 1024 * 1024),
    )(wmat, bcol, patches)
    return out[:cout, :nbig].reshape(cout, n, hp, wp)   # stays channel-major


def fc_fused(x, prep, *, tb_target=128):
    """x: (B, 400) f32 -> (B, 10) f32.  All three FC layers in one Pallas call,
    tiled over the batch axis with the (<0.3 MiB) weights resident in VMEM."""
    b, kdim = x.shape
    tb = min(tb_target, _round_up(b, 8))
    bp = _round_up(b, tb)
    xp = jnp.pad(x, ((0, bp - b), (0, 0)))
    w1, b1 = prep["wf1"], prep["bf1"]
    w2, b2 = prep["wf2"], prep["bf2"]
    w3, b3 = prep["wf3"], prep["bf3"]
    npad = w3.shape[1]
    resident = lambda a: pl.BlockSpec(a.shape, lambda i: (0, 0))
    out = pl.pallas_call(
        _fc_fused_kernel,
        out_shape=jax.ShapeDtypeStruct((bp, npad), jnp.float32),
        grid=(bp // tb,),
        in_specs=[pl.BlockSpec((tb, kdim), lambda i: (i, 0)),   # batch-tiled x
                  resident(w1), resident(b1),
                  resident(w2), resident(b2),
                  resident(w3), resident(b3)],
        out_specs=pl.BlockSpec((tb, npad), lambda i: (i, 0)),
        compiler_params=pltpu.CompilerParams(
            dimension_semantics=("parallel",)),
    )(xp, w1, b1, w2, b2, w3, b3)
    return out[:b, :10]


# ------------------------------ LeNet-5 model ------------------------------

def init_params(key):
    ks = jax.random.split(key, 10)
    s = 0.1
    return {
        "w1": jax.random.normal(ks[0], (6, 1, 5, 5), jnp.float32) * s,
        "b1": jax.random.normal(ks[1], (6,), jnp.float32) * s,
        "w2": jax.random.normal(ks[2], (16, 6, 5, 5), jnp.float32) * s,
        "b2": jax.random.normal(ks[3], (16,), jnp.float32) * s,
        "wf1": jax.random.normal(ks[4], (120, 400), jnp.float32) * s,
        "bf1": jax.random.normal(ks[5], (120,), jnp.float32) * s,
        "wf2": jax.random.normal(ks[6], (84, 120), jnp.float32) * s,
        "bf2": jax.random.normal(ks[7], (84,), jnp.float32) * s,
        "wf3": jax.random.normal(ks[8], (10, 84), jnp.float32) * s,
        "bf3": jax.random.normal(ks[9], (10,), jnp.float32) * s,
    }


def _prep_conv(w, b):
    """(Cout, Cin, k, k) f32 -> bf16 (Cp, CKKp) matrix + f32 (Cp, 1) bias column.
    CKKp only rounded to a multiple of 8 (the MXU zero-pads K internally)."""
    cout, cin, k, _ = w.shape
    ckk = cin * k * k
    cp, ckkp = _round_up(cout, 8), _round_up(ckk, 8)
    wm = jnp.pad(w.reshape(cout, ckk), ((0, cp - cout), (0, ckkp - ckk)))
    bc = jnp.pad(b.reshape(-1, 1), ((0, cp - cout), (0, 0)))
    return wm.astype(jnp.bfloat16), bc


def _prep_fc(w, b, in_pad, out_pad):
    """Torch Linear (out, in) -> bf16 (in_pad, out_pad) + f32 (1, out_pad) bias.
    Zero-padded rows/cols keep sigmoid(0)=0.5 padded activations cancelled."""
    out_dim, in_dim = w.shape
    wt = jnp.pad(w.T, ((0, in_pad - in_dim), (0, out_pad - out_dim)))
    bp = jnp.pad(b.reshape(1, -1), ((0, 0), (0, out_pad - out_dim)))
    return wt.astype(jnp.bfloat16), bp


def prepare_params(params):
    """One-time reshape / transpose / zero-pad / bf16-cast of all weights."""
    wm1, bc1 = _prep_conv(params["w1"], params["b1"])
    wm2, bc2 = _prep_conv(params["w2"], params["b2"])
    wf1, bf1 = _prep_fc(params["wf1"], params["bf1"], 400, 128)
    wf2, bf2 = _prep_fc(params["wf2"], params["bf2"], 128, 128)
    wf3, bf3 = _prep_fc(params["wf3"], params["bf3"], 128, 128)
    return dict(wm1=wm1, bc1=bc1, wm2=wm2, bc2=bc2,
                wf1=wf1, bf1=bf1, wf2=wf2, bf2=bf2, wf3=wf3, bf3=bf3)


def lenet5_forward(prep, x):
    """x: (N, 1, 28, 28) f32 -> (N, 10) f32 logits (matches LeNet5.forward)."""
    n = x.shape[0]
    # conv1(1->6, k=5, pad=2) + sigmoid + avgpool 2x2   -> (6, N, 14, 14)
    x = jnp.pad(x, ((0, 0), (0, 0), (2, 2), (2, 2)))
    x = x.transpose(1, 0, 2, 3)                        # channel-major (C,N,H,W)
    x = conv_sigmoid_pool(x, prep["wm1"], prep["bc1"], cout=6, k=5)
    # conv2(6->16, k=5) + sigmoid + avgpool 2x2         -> (16, N, 5, 5)
    x = conv_sigmoid_pool(x, prep["wm2"], prep["bc2"], cout=16, k=5)
    # Flatten in torch's NCHW .view(-1, 16*5*5) order, then the fused FC stack.
    x = x.transpose(1, 0, 2, 3).reshape(n, 16 * 5 * 5)
    return fc_fused(x, prep)


if __name__ == "__main__":
    key = jax.random.PRNGKey(0)
    pkey, xkey = jax.random.split(key)
    prep = prepare_params(init_params(pkey))
    # LeNet-5's fc1 (16*5*5) forces 28x28 single-channel inputs; batch kept small.
    x = jax.random.normal(xkey, (2, 1, 28, 28), jnp.float32)
    out = jax.jit(lenet5_forward)(prep, x)
    out = jax.block_until_ready(out)
    assert out.shape == (2, 10)
    print("KERNEL_OK")
</pallas_src>

<mosaic_0001>
module attributes {stable_mosaic.version = 11 : i64} {
  func.func @_conv_pool_kernel(%arg0: i32, %arg1: memref<8x32xbf16, #tpu.memory_space<vmem>>, %arg2: memref<8x1xf32, #tpu.memory_space<vmem>>, %arg3: memref<32x2048xbf16, #tpu.memory_space<vmem>>, %arg4: memref<8x512xf32, #tpu.memory_space<vmem>>) attributes {dimension_semantics = [#tpu.dimension_semantics<parallel>], iteration_bounds = array<i64: 1>, scalar_prefetch = 0 : i64, scratch_operands = 0 : i64, tpu.core_type = #tpu.core_type<tc>, window_params = [{pipeline_mode = #tpu.pipeline_mode<synchronous>, transform_indices = @transform_0, window_bounds = array<i64: 8, 32>}, {pipeline_mode = #tpu.pipeline_mode<synchronous>, transform_indices = @transform_1, window_bounds = array<i64: 8, 1>}, {transform_indices = @transform_2, window_bounds = array<i64: 32, 2048>}, {transform_indices = @transform_3, window_bounds = array<i64: 8, 512>}]} {
    %c0 = arith.constant 0 : index
    %c0_0 = arith.constant 0 : index
    %0 = vector.load %arg1[%c0, %c0_0] : memref<8x32xbf16, #tpu.memory_space<vmem>>, vector<8x32xbf16>
    %c0_1 = arith.constant 0 : index
    %c0_2 = arith.constant 0 : index
    %1 = vector.load %arg3[%c0_1, %c0_2] : memref<32x2048xbf16, #tpu.memory_space<vmem>>, vector<32x2048xbf16>
    %cst = arith.constant dense<0.000000e+00> : vector<8x2048xf32>
    %2 = tpu.matmul %0, %1, %cst {dimension_numbers = #tpu.dot_dimension_numbers<[1], [0], [0], [1], [0, 0, 1, 1], [], []>} : vector<8x32xbf16>, vector<32x2048xbf16>, vector<8x2048xf32> -> vector<8x2048xf32>
    %c0_3 = arith.constant 0 : index
    %c0_4 = arith.constant 0 : index
    %3 = vector.load %arg2[%c0_3, %c0_4] : memref<8x1xf32, #tpu.memory_space<vmem>>, vector<8x1xf32>
    %4 = vector.broadcast %3 : vector<8x1xf32> to vector<8x2048xf32>
    %5 = arith.addf %2, %4 : vector<8x2048xf32>
    %cst_5 = arith.constant 5.000000e-01 : f32
    %6 = vector.broadcast %cst_5 : f32 to vector<8x2048xf32>
    %7 = arith.mulf %6, %5 : vector<8x2048xf32>
    %8 = math.tanh %7 : vector<8x2048xf32>
    %cst_6 = arith.constant 5.000000e-01 : f32
    %9 = vector.broadcast %cst_6 : f32 to vector<8x2048xf32>
    %10 = arith.mulf %9, %8 : vector<8x2048xf32>
    %cst_7 = arith.constant 5.000000e-01 : f32
    %11 = vector.broadcast %cst_7 : f32 to vector<8x2048xf32>
    %12 = arith.addf %10, %11 : vector<8x2048xf32>
    %13 = vector.extract_strided_slice %12 {offsets = [0, 0], sizes = [8, 512], strides = [1, 1]} : vector<8x2048xf32> to vector<8x512xf32>
    %14 = vector.extract_strided_slice %12 {offsets = [0, 512], sizes = [8, 512], strides = [1, 1]} : vector<8x2048xf32> to vector<8x512xf32>
    %15 = arith.addf %13, %14 : vector<8x512xf32>
    %16 = vector.extract_strided_slice %12 {offsets = [0, 1024], sizes = [8, 512], strides = [1, 1]} : vector<8x2048xf32> to vector<8x512xf32>
    %17 = arith.addf %15, %16 : vector<8x512xf32>
    %18 = vector.extract_strided_slice %12 {offsets = [0, 1536], sizes = [8, 512], strides = [1, 1]} : vector<8x2048xf32> to vector<8x512xf32>
    %19 = arith.addf %17, %18 : vector<8x512xf32>
    %cst_8 = arith.constant 2.500000e-01 : f32
    %20 = vector.broadcast %cst_8 : f32 to vector<8x512xf32>
    %21 = arith.mulf %20, %19 : vector<8x512xf32>
    %c0_9 = arith.constant 0 : index
    %c0_10 = arith.constant 0 : index
    %22 = vector.load %arg4[%c0_9, %c0_10] : memref<8x512xf32, #tpu.memory_space<vmem>>, vector<8x512xf32>
    tpu.vector_store %arg4[%c0_9, %c0_10], %21 {strides = array<i32>} : memref<8x512xf32, #tpu.memory_space<vmem>>, vector<8x512xf32>,
    return
  }
  func.func @transform_0(%arg0: i32) -> (i32, i32) {
    %c0_i32 = arith.constant 0 : i32
    %c0_i32_0 = arith.constant 0 : i32
    %c0_i32_1 = arith.constant 0 : i32
    return %c0_i32, %c0_i32_0 : i32, i32
  }
  func.func @transform_1(%arg0: i32) -> (i32, i32) {
    %c0_i32 = arith.constant 0 : i32
    %c0_i32_0 = arith.constant 0 : i32
    %c0_i32_1 = arith.constant 0 : i32
    return %c0_i32, %c0_i32_0 : i32, i32
  }
  func.func @transform_2(%arg0: i32) -> (i32, i32) {
    %c0_i32 = arith.constant 0 : i32
    %c0_i32_0 = arith.constant 0 : i32
    return %c0_i32, %arg0 : i32, i32
  }
  func.func @transform_3(%arg0: i32) -> (i32, i32) {
    %c0_i32 = arith.constant 0 : i32
    %c0_i32_0 = arith.constant 0 : i32
    return %c0_i32, %arg0 : i32, i32
  }
}

module attributes {stable_mosaic.version = 11 : i64} {
  func.func @_conv_pool_kernel(%arg0: i32, %arg1: memref<16x152xbf16, #tpu.memory_space<vmem>>, %arg2: memref<16x1xf32, #tpu.memory_space<vmem>>, %arg3: memref<152x512xbf16, #tpu.memory_space<vmem>>, %arg4: memref<16x128xf32, #tpu.memory_space<vmem>>) attributes {dimension_semantics = [#tpu.dimension_semantics<parallel>], iteration_bounds = array<i64: 1>, scalar_prefetch = 0 : i64, scratch_operands = 0 : i64, tpu.core_type = #tpu.core_type<tc>, window_params = [{pipeline_mode = #tpu.pipeline_mode<synchronous>, transform_indices = @transform_0, window_bounds = array<i64: 16, 152>}, {pipeline_mode = #tpu.pipeline_mode<synchronous>, transform_indices = @transform_1, window_bounds = array<i64: 16, 1>}, {transform_indices = @transform_2, window_bounds = array<i64: 152, 512>}, {transform_indices = @transform_3, window_bounds = array<i64: 16, 128>}]} {
    %c0 = arith.constant 0 : index
    %c0_0 = arith.constant 0 : index
    %0 = vector.load %arg1[%c0, %c0_0] : memref<16x152xbf16, #tpu.memory_space<vmem>>, vector<16x152xbf16>
    %c0_1 = arith.constant 0 : index
    %c0_2 = arith.constant 0 : index
    %1 = vector.load %arg3[%c0_1, %c0_2] : memref<152x512xbf16, #tpu.memory_space<vmem>>, vector<152x512xbf16>
    %cst = arith.constant dense<0.000000e+00> : vector<16x512xf32>
    %2 = tpu.matmul %0, %1, %cst {dimension_numbers = #tpu.dot_dimension_numbers<[1], [0], [0], [1], [0, 0, 1, 1], [], []>} : vector<16x152xbf16>, vector<152x512xbf16>, vector<16x512xf32> -> vector<16x512xf32>
    %c0_3 = arith.constant 0 : index
    %c0_4 = arith.constant 0 : index
    %3 = vector.load %arg2[%c0_3, %c0_4] : memref<16x1xf32, #tpu.memory_space<vmem>>, vector<16x1xf32>
    %4 = vector.broadcast %3 : vector<16x1xf32> to vector<16x512xf32>
    %5 = arith.addf %2, %4 : vector<16x512xf32>
    %cst_5 = arith.constant 5.000000e-01 : f32
    %6 = vector.broadcast %cst_5 : f32 to vector<16x512xf32>
    %7 = arith.mulf %6, %5 : vector<16x512xf32>
    %8 = math.tanh %7 : vector<16x512xf32>
    %cst_6 = arith.constant 5.000000e-01 : f32
    %9 = vector.broadcast %cst_6 : f32 to vector<16x512xf32>
    %10 = arith.mulf %9, %8 : vector<16x512xf32>
    %cst_7 = arith.constant 5.000000e-01 : f32
    %11 = vector.broadcast %cst_7 : f32 to vector<16x512xf32>
    %12 = arith.addf %10, %11 : vector<16x512xf32>
    %13 = vector.extract_strided_slice %12 {offsets = [0, 0], sizes = [16, 128], strides = [1, 1]} : vector<16x512xf32> to vector<16x128xf32>
    %14 = vector.extract_strided_slice %12 {offsets = [0, 128], sizes = [16, 128], strides = [1, 1]} : vector<16x512xf32> to vector<16x128xf32>
    %15 = arith.addf %13, %14 : vector<16x128xf32>
    %16 = vector.extract_strided_slice %12 {offsets = [0, 256], sizes = [16, 128], strides = [1, 1]} : vector<16x512xf32> to vector<16x128xf32>
    %17 = arith.addf %15, %16 : vector<16x128xf32>
    %18 = vector.extract_strided_slice %12 {offsets = [0, 384], sizes = [16, 128], strides = [1, 1]} : vector<16x512xf32> to vector<16x128xf32>
    %19 = arith.addf %17, %18 : vector<16x128xf32>
    %cst_8 = arith.constant 2.500000e-01 : f32
    %20 = vector.broadcast %cst_8 : f32 to vector<16x128xf32>
    %21 = arith.mulf %20, %19 : vector<16x128xf32>
    %c0_9 = arith.constant 0 : index
    %c0_10 = arith.constant 0 : index
    %22 = vector.load %arg4[%c0_9, %c0_10] : memref<16x128xf32, #tpu.memory_space<vmem>>, vector<16x128xf32>
    tpu.vector_store %arg4[%c0_9, %c0_10], %21 {strides = array<i32>} : memref<16x128xf32, #tpu.memory_space<vmem>>, vector<16x128xf32>,
    return
  }
  func.func @transform_0(%arg0: i32) -> (i32, i32) {
    %c0_i32 = arith.constant 0 : i32
    %c0_i32_0 = arith.constant 0 : i32
    %c0_i32_1 = arith.constant 0 : i32
    return %c0_i32, %c0_i32_0 : i32, i32
  }
  func.func @transform_1(%arg0: i32) -> (i32, i32) {
    %c0_i32 = arith.constant 0 : i32
    %c0_i32_0 = arith.constant 0 : i32
    %c0_i32_1 = arith.constant 0 : i32
    return %c0_i32, %c0_i32_0 : i32, i32
  }
  func.func @transform_2(%arg0: i32) -> (i32, i32) {
    %c0_i32 = arith.constant 0 : i32
    %c0_i32_0 = arith.constant 0 : i32
    return %c0_i32, %arg0 : i32, i32
  }
  func.func @transform_3(%arg0: i32) -> (i32, i32) {
    %c0_i32 = arith.constant 0 : i32
    %c0_i32_0 = arith.constant 0 : i32
    return %c0_i32, %arg0 : i32, i32
  }
}

module attributes {stable_mosaic.version = 11 : i64} {
  func.func @_fc_fused_kernel(%arg0: i32, %arg1: memref<8x400xf32, #tpu.memory_space<vmem>>, %arg2: memref<400x128xbf16, #tpu.memory_space<vmem>>, %arg3: memref<1x128xf32, #tpu.memory_space<vmem>>, %arg4: memref<128x128xbf16, #tpu.memory_space<vmem>>, %arg5: memref<1x128xf32, #tpu.memory_space<vmem>>, %arg6: memref<128x128xbf16, #tpu.memory_space<vmem>>, %arg7: memref<1x128xf32, #tpu.memory_space<vmem>>, %arg8: memref<8x128xf32, #tpu.memory_space<vmem>>) attributes {dimension_semantics = [#tpu.dimension_semantics<parallel>], iteration_bounds = array<i64: 1>, scalar_prefetch = 0 : i64, scratch_operands = 0 : i64, tpu.core_type = #tpu.core_type<tc>, window_params = [{transform_indices = @transform_0, window_bounds = array<i64: 8, 400>}, {pipeline_mode = #tpu.pipeline_mode<synchronous>, transform_indices = @transform_1, window_bounds = array<i64: 400, 128>}, {pipeline_mode = #tpu.pipeline_mode<synchronous>, transform_indices = @transform_2, window_bounds = array<i64: 1, 128>}, {pipeline_mode = #tpu.pipeline_mode<synchronous>, transform_indices = @transform_3, window_bounds = array<i64: 128, 128>}, {pipeline_mode = #tpu.pipeline_mode<synchronous>, transform_indices = @transform_4, window_bounds = array<i64: 1, 128>}, {pipeline_mode = #tpu.pipeline_mode<synchronous>, transform_indices = @transform_5, window_bounds = array<i64: 128, 128>}, {pipeline_mode = #tpu.pipeline_mode<synchronous>, transform_indices = @transform_6, window_bounds = array<i64: 1, 128>}, {transform_indices = @transform_7, window_bounds = array<i64: 8, 128>}]} {
    %c0 = arith.constant 0 : index
    %c0_0 = arith.constant 0 : index
    %0 = vector.load %arg1[%c0, %c0_0] : memref<8x400xf32, #tpu.memory_space<vmem>>, vector<8x400xf32>
    %1 = arith.truncf %0 : vector<8x400xf32> to vector<8x400xbf16>
    %c0_1 = arith.constant 0 : index
    %c0_2 = arith.constant 0 : index
    %2 = vector.load %arg2[%c0_1, %c0_2] : memref<400x128xbf16, #tpu.memory_space<vmem>>, vector<400x128xbf16>
    %cst = arith.constant dense<0.000000e+00> : vector<8x128xf32>
    %3 = tpu.matmul %1, %2, %cst {dimension_numbers = #tpu.dot_dimension_numbers<[1], [0], [0], [1], [0, 0, 1, 1], [], []>} : vector<8x400xbf16>, vector<400x128xbf16>, vector<8x128xf32> -> vector<8x128xf32>
    %c0_3 = arith.constant 0 : index
    %c0_4 = arith.constant 0 : index
    %4 = vector.load %arg3[%c0_3, %c0_4] : memref<1x128xf32, #tpu.memory_space<vmem>>, vector<1x128xf32>
    %5 = vector.broadcast %4 : vector<1x128xf32> to vector<8x128xf32>
    %6 = arith.addf %3, %5 : vector<8x128xf32>
    %cst_5 = arith.constant 5.000000e-01 : f32
    %7 = vector.broadcast %cst_5 : f32 to vector<8x128xf32>
    %8 = arith.mulf %7, %6 : vector<8x128xf32>
    %9 = math.tanh %8 : vector<8x128xf32>
    %cst_6 = arith.constant 5.000000e-01 : f32
    %10 = vector.broadcast %cst_6 : f32 to vector<8x128xf32>
    %11 = arith.mulf %10, %9 : vector<8x128xf32>
    %cst_7 = arith.constant 5.000000e-01 : f32
    %12 = vector.broadcast %cst_7 : f32 to vector<8x128xf32>
    %13 = arith.addf %11, %12 : vector<8x128xf32>
    %14 = arith.truncf %13 : vector<8x128xf32> to vector<8x128xbf16>
    %c0_8 = arith.constant 0 : index
    %c0_9 = arith.constant 0 : index
    %15 = vector.load %arg4[%c0_8, %c0_9] : memref<128x128xbf16, #tpu.memory_space<vmem>>, vector<128x128xbf16>
    %cst_10 = arith.constant dense<0.000000e+00> : vector<8x128xf32>
    %16 = tpu.matmul %14, %15, %cst_10 {dimension_numbers = #tpu.dot_dimension_numbers<[1], [0], [0], [1], [0, 0, 1, 1], [], []>} : vector<8x128xbf16>, vector<128x128xbf16>, vector<8x128xf32> -> vector<8x128xf32>
    %c0_11 = arith.constant 0 : index
    %c0_12 = arith.constant 0 : index
    %17 = vector.load %arg5[%c0_11, %c0_12] : memref<1x128xf32, #tpu.memory_space<vmem>>, vector<1x128xf32>
    %18 = vector.broadcast %17 : vector<1x128xf32> to vector<8x128xf32>
    %19 = arith.addf %16, %18 : vector<8x128xf32>
    %cst_13 = arith.constant 5.000000e-01 : f32
    %20 = vector.broadcast %cst_13 : f32 to vector<8x128xf32>
    %21 = arith.mulf %20, %19 : vector<8x128xf32>
    %22 = math.tanh %21 : vector<8x128xf32>
    %cst_14 = arith.constant 5.000000e-01 : f32
    %23 = vector.broadcast %cst_14 : f32 to vector<8x128xf32>
    %24 = arith.mulf %23, %22 : vector<8x128xf32>
    %cst_15 = arith.constant 5.000000e-01 : f32
    %25 = vector.broadcast %cst_15 : f32 to vector<8x128xf32>
    %26 = arith.addf %24, %25 : vector<8x128xf32>
    %27 = arith.truncf %26 : vector<8x128xf32> to vector<8x128xbf16>
    %c0_16 = arith.constant 0 : index
    %c0_17 = arith.constant 0 : index
    %28 = vector.load %arg6[%c0_16, %c0_17] : memref<128x128xbf16, #tpu.memory_space<vmem>>, vector<128x128xbf16>
    %cst_18 = arith.constant dense<0.000000e+00> : vector<8x128xf32>
    %29 = tpu.matmul %27, %28, %cst_18 {dimension_numbers = #tpu.dot_dimension_numbers<[1], [0], [0], [1], [0, 0, 1, 1], [], []>} : vector<8x128xbf16>, vector<128x128xbf16>, vector<8x128xf32> -> vector<8x128xf32>
    %c0_19 = arith.constant 0 : index
    %c0_20 = arith.constant 0 : index
    %30 = vector.load %arg7[%c0_19, %c0_20] : memref<1x128xf32, #tpu.memory_space<vmem>>, vector<1x128xf32>
    %31 = vector.broadcast %30 : vector<1x128xf32> to vector<8x128xf32>
    %32 = arith.addf %29, %31 : vector<8x128xf32>
    %c0_21 = arith.constant 0 : index
    %c0_22 = arith.constant 0 : index
    %33 = vector.load %arg8[%c0_21, %c0_22] : memref<8x128xf32, #tpu.memory_space<vmem>>, vector<8x128xf32>
    tpu.vector_store %arg8[%c0_21, %c0_22], %32 {strides = array<i32>} : memref<8x128xf32, #tpu.memory_space<vmem>>, vector<8x128xf32>,
    return
  }
  func.func @transform_0(%arg0: i32) -> (i32, i32) {
    %c0_i32 = arith.constant 0 : i32
    %c0_i32_0 = arith.constant 0 : i32
    return %arg0, %c0_i32 : i32, i32
  }
  func.func @transform_1(%arg0: i32) -> (i32, i32) {
    %c0_i32 = arith.constant 0 : i32
    %c0_i32_0 = arith.constant 0 : i32
    %c0_i32_1 = arith.constant 0 : i32
    return %c0_i32, %c0_i32_0 : i32, i32
  }
  func.func @transform_2(%arg0: i32) -> (i32, i32) {
    %c0_i32 = arith.constant 0 : i32
    %c0_i32_0 = arith.constant 0 : i32
    %c0_i32_1 = arith.constant 0 : i32
    return %c0_i32, %c0_i32_0 : i32, i32
  }
  func.func @transform_3(%arg0: i32) -> (i32, i32) {
    %c0_i32 = arith.constant 0 : i32
    %c0_i32_0 = arith.constant 0 : i32
    %c0_i32_1 = arith.constant 0 : i32
    return %c0_i32, %c0_i32_0 : i32, i32
  }
  func.func @transform_4(%arg0: i32) -> (i32, i32) {
    %c0_i32 = arith.constant 0 : i32
    %c0_i32_0 = arith.constant 0 : i32
    %c0_i32_1 = arith.constant 0 : i32
    return %c0_i32, %c0_i32_0 : i32, i32
  }
  func.func @transform_5(%arg0: i32) -> (i32, i32) {
    %c0_i32 = arith.constant 0 : i32
    %c0_i32_0 = arith.constant 0 : i32
    %c0_i32_1 = arith.constant 0 : i32
    return %c0_i32, %c0_i32_0 : i32, i32
  }
  func.func @transform_6(%arg0: i32) -> (i32, i32) {
    %c0_i32 = arith.constant 0 : i32
    %c0_i32_0 = arith.constant 0 : i32
    %c0_i32_1 = arith.constant 0 : i32
    return %c0_i32, %c0_i32_0 : i32, i32
  }
  func.func @transform_7(%arg0: i32) -> (i32, i32) {
    %c0_i32 = arith.constant 0 : i32
    %c0_i32_0 = arith.constant 0 : i32
    return %arg0, %c0_i32 : i32, i32
  }
}

</mosaic_0001>

<llo_original>
// kernel: lenet5_forward.3
$region0: #{lenet5_forward.3}
  #allocation0 [shape = 'u32[]', space=smem, size = 0x4, offset = 0x4, fixed_abs, tag = 'smem constant byte address 0x4 - core index']
  #allocation1 [shape = 'u32[72,128]{1,0:T(1,128)}', space=vmem, size = 0x9000, scoped, tag = 'internal scratch']
  %s0 = inlined_call_operand.vmem [shape: bf16[8,32], index: 0, kind: input, shape index: {}]
  %s1 = inlined_call_operand.vmem [shape: f32[8,1], index: 1, kind: input, shape index: {}]
  %s2 = inlined_call_operand.vmem [shape: bf16[32,2048], index: 2, kind: input, shape index: {}]
  %s3 = inlined_call_operand.vmem [shape: f32[8,512], index: 3, kind: output, shape index: {}]
  %s4 = sld [smem:[#allocation0]]
  $region22: #{lenet5_forward.3} parent=0
    _
  %s6 = ssub.s32 1, %s4
  %s7 = scalar_select 0, %s6, %s4
  // Predicated region
  $region2: #{lenet5_forward.3} parent=0 // pred_check
    _
  $region3: #{lenet5_forward.3} parent=0 // pred_check_branch
    %9 = sbr.rel (0) target = $region5
  $region4: #{lenet5_forward.3} parent=0 // pred_region
    _
  $region5: #{lenet5_forward.3} parent=0 // pred_fallthru
    _
  // Predicated region
  $region6: #{lenet5_forward.3} parent=0 // pred_check
    _
  $region7: #{lenet5_forward.3} parent=0 // pred_check_branch
    %11 = sbr.rel (0) target = $region9
  $region8: #{lenet5_forward.3} parent=0 // pred_region
    _
  $region9: #{lenet5_forward.3} parent=0 // pred_fallthru
    _
  // Predicated region
  $region10: #{lenet5_forward.3} parent=0 // pred_check
    _
  $region11: #{lenet5_forward.3} parent=0 // pred_check_branch
    %13 = sbr.rel (0) target = $region13
  $region12: #{lenet5_forward.3} parent=0 // pred_region
    _
  $region13: #{lenet5_forward.3} parent=0 // pred_fallthru
    _
  %v15 = vld [vmem:[%s0] sm:$0xf]
  %v16 = vld [vmem:[%s2] sm:$0xff]
  %v17 = vld [vmem:[%s2 + $0x8] sm:$0xff]
  %v18 = vld [vmem:[%s2 + $0x10] sm:$0xff]
  %v19 = vld [vmem:[%s2 + $0x18] sm:$0xff]
  %v20 = vld [vmem:[%s2 + $0x20] sm:$0xff]
  %v21 = vld [vmem:[%s2 + $0x28] sm:$0xff]
  %v22 = vld [vmem:[%s2 + $0x30] sm:$0xff]
  %v23 = vld [vmem:[%s2 + $0x38] sm:$0xff]
  %v24 = vld [vmem:[%s2 + $0x40] sm:$0xff]
  %v25 = vld [vmem:[%s2 + $0x48] sm:$0xff]
  %v26 = vld [vmem:[%s2 + $0x50] sm:$0xff]
  %v27 = vld [vmem:[%s2 + $0x58] sm:$0xff]
  %v28 = vld [vmem:[%s2 + $0x60] sm:$0xff]
  %v29 = vld [vmem:[%s2 + $0x68] sm:$0xff]
  %v30 = vld [vmem:[%s2 + $0x70] sm:$0xff]
  %v31 = vld [vmem:[%s2 + $0x78] sm:$0xff]
  %v32 = vld [vmem:[%s2 + $0x80] sm:$0xff]
  %v33 = vld [vmem:[%s2 + $0x88] sm:$0xff]
  %v34 = vld [vmem:[%s2 + $0x90] sm:$0xff]
  %v35 = vld [vmem:[%s2 + $0x98] sm:$0xff]
  %v36 = vld [vmem:[%s2 + $0xa0] sm:$0xff]
  %v37 = vld [vmem:[%s2 + $0xa8] sm:$0xff]
  %v38 = vld [vmem:[%s2 + $0xb0] sm:$0xff]
  %v39 = vld [vmem:[%s2 + $0xb8] sm:$0xff]
  %v40 = vld [vmem:[%s2 + $0xc0] sm:$0xff]
  %v41 = vld [vmem:[%s2 + $0xc8] sm:$0xff]
  %v42 = vld [vmem:[%s2 + $0xd0] sm:$0xff]
  %v43 = vld [vmem:[%s2 + $0xd8] sm:$0xff]
  %v44 = vld [vmem:[%s2 + $0xe0] sm:$0xff]
  %v45 = vld [vmem:[%s2 + $0xe8] sm:$0xff]
  %v46 = vld [vmem:[%s2 + $0xf0] sm:$0xff]
  %v47 = vld [vmem:[%s2 + $0xf8] sm:$0xff]
  %v48 = vld [vmem:[%s1] sm:$0xff]
  %50 = vset.pattern.permute.xlu0 0
  %51 = vperm.xlu0 %50, %v48
  %v52 = vpop.permute.xlu0 %51
  %v86 = vunpack.c.l.b16 %v16
  %v87 = vunpack.c.h.b16 %v16
  %v88 = vunpack.c.l.b16 %v17
  %v89 = vunpack.c.h.b16 %v17
  %v90 = vunpack.c.l.b16 %v18
  %v91 = vunpack.c.h.b16 %v18
  %v92 = vunpack.c.l.b16 %v19
  %v93 = vunpack.c.h.b16 %v19
  %v94 = vunpack.c.l.b16 %v20
  %v95 = vunpack.c.h.b16 %v20
  %v96 = vunpack.c.l.b16 %v21
  %v97 = vunpack.c.h.b16 %v21
  %v98 = vunpack.c.l.b16 %v22
  %v99 = vunpack.c.h.b16 %v22
  %v100 = vunpack.c.l.b16 %v23
  %v101 = vunpack.c.h.b16 %v23
  %v102 = vunpack.c.l.b16 %v24
  %v103 = vunpack.c.h.b16 %v24
  %v104 = vunpack.c.l.b16 %v25
  %v105 = vunpack.c.h.b16 %v25
  %v106 = vunpack.c.l.b16 %v26
  %v107 = vunpack.c.h.b16 %v26
  %v108 = vunpack.c.l.b16 %v27
  %v109 = vunpack.c.h.b16 %v27
  %v110 = vunpack.c.l.b16 %v28
  %v111 = vunpack.c.h.b16 %v28
  %v112 = vunpack.c.l.b16 %v29
  %v113 = vunpack.c.h.b16 %v29
  %v114 = vunpack.c.l.b16 %v30
  %v115 = vunpack.c.h.b16 %v30
  %v116 = vunpack.c.l.b16 %v31
  %v117 = vunpack.c.h.b16 %v31
  %v118 = vunpack.c.l.b16 %v32
  %v119 = vunpack.c.h.b16 %v32
  %v120 = vunpack.c.l.b16 %v33
  %v121 = vunpack.c.h.b16 %v33
  %v122 = vunpack.c.l.b16 %v34
  %v123 = vunpack.c.h.b16 %v34
  %v124 = vunpack.c.l.b16 %v35
  %v125 = vunpack.c.h.b16 %v35
  %v126 = vunpack.c.l.b16 %v36
  %v127 = vunpack.c.h.b16 %v36
  %v128 = vunpack.c.l.b16 %v37
  %v129 = vunpack.c.h.b16 %v37
  %v130 = vunpack.c.l.b16 %v38
  %v131 = vunpack.c.h.b16 %v38
  %v132 = vunpack.c.l.b16 %v39
  %v133 = vunpack.c.h.b16 %v39
  %v134 = vunpack.c.l.b16 %v40
  %v135 = vunpack.c.h.b16 %v40
  %v136 = vunpack.c.l.b16 %v41
  %v137 = vunpack.c.h.b16 %v41
  %v138 = vunpack.c.l.b16 %v42
  %v139 = vunpack.c.h.b16 %v42
  %v140 = vunpack.c.l.b16 %v43
  %v141 = vunpack.c.h.b16 %v43
  %v142 = vunpack.c.l.b16 %v44
  %v143 = vunpack.c.h.b16 %v44
  %v144 = vunpack.c.l.b16 %v45
  %v145 = vunpack.c.h.b16 %v45
  %v146 = vunpack.c.l.b16 %v46
  %v147 = vunpack.c.h.b16 %v46
  %v148 = vunpack.c.l.b16 %v47
  %v149 = vunpack.c.h.b16 %v47
  %v150 = vpack.c.b16 %v102, %v86
  %v151 = vpack.c.b16 %v103, %v87
  %v152 = vpack.c.b16 %v104, %v88
  %v153 = vpack.c.b16 %v105, %v89
  %v154 = vpack.c.b16 %v106, %v90
  %v155 = vpack.c.b16 %v107, %v91
  %v156 = vpack.c.b16 %v108, %v92
  %v157 = vpack.c.b16 %v109, %v93
  %v158 = vpack.c.b16 %v110, %v94
  %v159 = vpack.c.b16 %v111, %v95
  %v160 = vpack.c.b16 %v112, %v96
  %v161 = vpack.c.b16 %v113, %v97
  %v162 = vpack.c.b16 %v114, %v98
  %v163 = vpack.c.b16 %v115, %v99
  %v164 = vpack.c.b16 %v116, %v100
  %v165 = vpack.c.b16 %v117, %v101
  %v166 = vpack.c.b16 %v134, %v118
  %v167 = vpack.c.b16 %v135, %v119
  %v168 = vpack.c.b16 %v136, %v120
  %v169 = vpack.c.b16 %v137, %v121
  %v170 = vpack.c.b16 %v138, %v122
  %v171 = vpack.c.b16 %v139, %v123
  %v172 = vpack.c.b16 %v140, %v124
  %v173 = vpack.c.b16 %v141, %v125
  %v174 = vpack.c.b16 %v142, %v126
  %v175 = vpack.c.b16 %v143, %v127
  %v176 = vpack.c.b16 %v144, %v128
  %v177 = vpack.c.b16 %v145, %v129
  %v178 = vpack.c.b16 %v146, %v130
  %v179 = vpack.c.b16 %v147, %v131
  %v180 = vpack.c.b16 %v148, %v132
  %v181 = vpack.c.b16 %v149, %v133
  %vm214 = vcmask 261120
  %v216 = vsel %vm214, %v15, 0
  %218 = vmatpush.bf16.msra.mxu0 0
  %219 = vmatpush.bf16.msra.mxu0 0
  %220 = vmatpush.bf16.msra.mxu0 0
  %221 = vmatpush.bf16.msra.mxu0 0
  %222 = vmatpush.bf16.msra.mxu0 0
  %223 = vmatpush.bf16.msra.mxu0 0
  %224 = vmatpush.bf16.msra.mxu0 %v166
  %225 = vmatpush.bf16.msra.mxu0 %v150
  %226 = vmatmul.bf16.gmra.mxu0 %v216
  %v227 = vpop.f32.mrf.mxu0
  %v228 = vadd.f32 %v52, %v227
  %v229 = vpop.f32.mrf.mxu0
  %230 = vdwg.mxu0
  %231 = vmatpush.bf16.msra.mxu0 0
  %232 = vmatpush.bf16.msra.mxu0 0
  %233 = vmatpush.bf16.msra.mxu0 0
  %234 = vmatpush.bf16.msra.mxu0 0
  %235 = vmatpush.bf16.msra.mxu0 0
  %236 = vmatpush.bf16.msra.mxu0 0
  %237 = vmatpush.bf16.msra.mxu0 %v167
  %238 = vmatpush.bf16.msra.mxu0 %v151
  %239 = vmatmul.bf16.gmra.mxu0 %v216
  %v240 = vpop.f32.mrf.mxu0
  %v241 = vadd.f32 %v52, %v240
  %v242 = vpop.f32.mrf.mxu0
  %243 = vdwg.mxu0
  %244 = vmatpush.bf16.msra.mxu0 0
  %245 = vmatpush.bf16.msra.mxu0 0
  %246 = vmatpush.bf16.msra.mxu0 0
  %247 = vmatpush.bf16.msra.mxu0 0
  %248 = vmatpush.bf16.msra.mxu0 0
  %249 = vmatpush.bf16.msra.mxu0 0
  %250 = vmatpush.bf16.msra.mxu0 %v168
  %251 = vmatpush.bf16.msra.mxu0 %v152
  %252 = vmatmul.bf16.gmra.mxu0 %v216
  %v253 = vpop.f32.mrf.mxu0
  %v254 = vadd.f32 %v52, %v253
  %v255 = vpop.f32.mrf.mxu0
  %256 = vdwg.mxu0
  %257 = vmatpush.bf16.msra.mxu0 0
  %258 = vmatpush.bf16.msra.mxu0 0
  %259 = vmatpush.bf16.msra.mxu0 0
  %260 = vmatpush.bf16.msra.mxu0 0
  %261 = vmatpush.bf16.msra.mxu0 0
  %262 = vmatpush.bf16.msra.mxu0 0
  %263 = vmatpush.bf16.msra.mxu0 %v169
  %264 = vmatpush.bf16.msra.mxu0 %v153
  %265 = vmatmul.bf16.gmra.mxu0 %v216
  %v266 = vpop.f32.mrf.mxu0
  %v267 = vadd.f32 %v52, %v266
  %v268 = vpop.f32.mrf.mxu0
  %269 = vdwg.mxu0
  %270 = vmatpush.bf16.msra.mxu0 0
  %271 = vmatpush.bf16.msra.mxu0 0
  %272 = vmatpush.bf16.msra.mxu0 0
  %273 = vmatpush.bf16.msra.mxu0 0
  %274 = vmatpush.bf16.msra.mxu0 0
  %275 = vmatpush.bf16.msra.mxu0 0
  %276 = vmatpush.bf16.msra.mxu0 %v170
  %277 = vmatpush.bf16.msra.mxu0 %v154
  %278 = vmatmul.bf16.gmra.mxu0 %v216
  %v279 = vpop.f32.mrf.mxu0
  %v280 = vadd.f32 %v52, %v279
  %v281 = vpop.f32.mrf.mxu0
  %282 = vdwg.mxu0
  %283 = vmatpush.bf16.msra.mxu0 0
  %284 = vmatpush.bf16.msra.mxu0 0
  %285 = vmatpush.bf16.msra.mxu0 0
  %286 = vmatpush.bf16.msra.mxu0 0
  %287 = vmatpush.bf16.msra.mxu0 0
  %288 = vmatpush.bf16.msra.mxu0 0
  %289 = vmatpush.bf16.msra.mxu0 %v171
  %290 = vmatpush.bf16.msra.mxu0 %v155
  %291 = vmatmul.bf16.gmra.mxu0 %v216
  %v292 = vpop.f32.mrf.mxu0
  %v293 = vadd.f32 %v52, %v292
  %v294 = vpop.f32.mrf.mxu0
  %295 = vdwg.mxu0
  %296 = vmatpush.bf16.msra.mxu0 0
  %297 = vmatpush.bf16.msra.mxu0 0
  %298 = vmatpush.bf16.msra.mxu0 0
  %299 = vmatpush.bf16.msra.mxu0 0
  %300 = vmatpush.bf16.msra.mxu0 0
  %301 = vmatpush.bf16.msra.mxu0 0
  %302 = vmatpush.bf16.msra.mxu0 %v172
  %303 = vmatpush.bf16.msra.mxu0 %v156
  %304 = vmatmul.bf16.gmra.mxu0 %v216
  %v305 = vpop.f32.mrf.mxu0
  %v306 = vadd.f32 %v52, %v305
  %v307 = vpop.f32.mrf.mxu0
  %308 = vdwg.mxu0
  %309 = vmatpush.bf16.msra.mxu0 0
  %310 = vmatpush.bf16.msra.mxu0 0
  %311 = vmatpush.bf16.msra.mxu0 0
  %312 = vmatpush.bf16.msra.mxu0 0
  %313 = vmatpush.bf16.msra.mxu0 0
  %314 = vmatpush.bf16.msra.mxu0 0
  %315 = vmatpush.bf16.msra.mxu0 %v173
  %316 = vmatpush.bf16.msra.mxu0 %v157
  %317 = vmatmul.bf16.gmra.mxu0 %v216
  %v318 = vpop.f32.mrf.mxu0
  %v319 = vadd.f32 %v52, %v318
  %v320 = vpop.f32.mrf.mxu0
  %321 = vdwg.mxu0
  %322 = vmatpush.bf16.msra.mxu0 0
  %323 = vmatpush.bf16.msra.mxu0 0
  %324 = vmatpush.bf16.msra.mxu0 0
  %325 = vmatpush.bf16.msra.mxu0 0
  %326 = vmatpush.bf16.msra.mxu0 0
  %327 = vmatpush.bf16.msra.mxu0 0
  %328 = vmatpush.bf16.msra.mxu0 %v174
  %329 = vmatpush.bf16.msra.mxu0 %v158
  %330 = vmatmul.bf16.gmra.mxu0 %v216
  %v331 = vpop.f32.mrf.mxu0
  %v332 = vadd.f32 %v52, %v331
  %v333 = vpop.f32.mrf.mxu0
  %334 = vdwg.mxu0
  %335 = vmatpush.bf16.msra.mxu0 0
  %336 = vmatpush.bf16.msra.mxu0 0
  %337 = vmatpush.bf16.msra.mxu0 0
  %338 = vmatpush.bf16.msra.mxu0 0
  %339 = vmatpush.bf16.msra.mxu0 0
  %340 = vmatpush.bf16.msra.mxu0 0
  %341 = vmatpush.bf16.msra.mxu0 %v175
  %342 = vmatpush.bf16.msra.mxu0 %v159
  %343 = vmatmul.bf16.gmra.mxu0 %v216
  %v344 = vpop.f32.mrf.mxu0
  %v345 = vadd.f32 %v52, %v344
  %v346 = vpop.f32.mrf.mxu0
  %347 = vdwg.mxu0
  %348 = vmatpush.bf16.msra.mxu0 0
  %349 = vmatpush.bf16.msra.mxu0 0
  %350 = vmatpush.bf16.msra.mxu0 0
  %351 = vmatpush.bf16.msra.mxu0 0
  %352 = vmatpush.bf16.msra.mxu0 0
  %353 = vmatpush.bf16.msra.mxu0 0
  %354 = vmatpush.bf16.msra.mxu0 %v176
  %355 = vmatpush.bf16.msra.mxu0 %v160
  %356 = vmatmul.bf16.gmra.mxu0 %v216
  %v357 = vpop.f32.mrf.mxu0
  %v358 = vadd.f32 %v52, %v357
  %v359 = vpop.f32.mrf.mxu0
  %360 = vdwg.mxu0
  %361 = vmatpush.bf16.msra.mxu0 0
  %362 = vmatpush.bf16.msra.mxu0 0
  %363 = vmatpush.bf16.msra.mxu0 0
  %364 = vmatpush.bf16.msra.mxu0 0
  %365 = vmatpush.bf16.msra.mxu0 0
  %366 = vmatpush.bf16.msra.mxu0 0
  %367 = vmatpush.bf16.msra.mxu0 %v177
  %368 = vmatpush.bf16.msra.mxu0 %v161
  %369 = vmatmul.bf16.gmra.mxu0 %v216
  %v370 = vpop.f32.mrf.mxu0
  %v371 = vadd.f32 %v52, %v370
  %v372 = vpop.f32.mrf.mxu0
  %373 = vdwg.mxu0
  %374 = vmatpush.bf16.msra.mxu0 0
  %375 = vmatpush.bf16.msra.mxu0 0
  %376 = vmatpush.bf16.msra.mxu0 0
  %377 = vmatpush.bf16.msra.mxu0 0
  %378 = vmatpush.bf16.msra.mxu0 0
  %379 = vmatpush.bf16.msra.mxu0 0
  %380 = vmatpush.bf16.msra.mxu0 %v178
  %381 = vmatpush.bf16.msra.mxu0 %v162
  %382 = vmatmul.bf16.gmra.mxu0 %v216
  %v383 = vpop.f32.mrf.mxu0
  %v384 = vadd.f32 %v52, %v383
  %v385 = vpop.f32.mrf.mxu0
  %386 = vdwg.mxu0
  %387 = vmatpush.bf16.msra.mxu0 0
  %388 = vmatpush.bf16.msra.mxu0 0
  %389 = vmatpush.bf16.msra.mxu0 0
  %390 = vmatpush.bf16.msra.mxu0 0
  %391 = vmatpush.bf16.msra.mxu0 0
  %392 = vmatpush.bf16.msra.mxu0 0
  %393 = vmatpush.bf16.msra.mxu0 %v179
  %394 = vmatpush.bf16.msra.mxu0 %v163
  %395 = vmatmul.bf16.gmra.mxu0 %v216
  %v396 = vpop.f32.mrf.mxu0
  %v397 = vadd.f32 %v52, %v396
  %v398 = vpop.f32.mrf.mxu0
  %399 = vdwg.mxu0
  %400 = vmatpush.bf16.msra.mxu0 0
  %401 = vmatpush.bf16.msra.mxu0 0
  %402 = vmatpush.bf16.msra.mxu0 0
  %403 = vmatpush.bf16.msra.mxu0 0
  %404 = vmatpush.bf16.msra.mxu0 0
  %405 = vmatpush.bf16.msra.mxu0 0
  %406 = vmatpush.bf16.msra.mxu0 %v180
  %407 = vmatpush.bf16.msra.mxu0 %v164
  %408 = vmatmul.bf16.gmra.mxu0 %v216
  %v409 = vpop.f32.mrf.mxu0
  %v410 = vadd.f32 %v52, %v409
  %v411 = vpop.f32.mrf.mxu0
  %412 = vdwg.mxu0
  %413 = vmatpush.bf16.msra.mxu0 0
  %414 = vmatpush.bf16.msra.mxu0 0
  %415 = vmatpush.bf16.msra.mxu0 0
  %416 = vmatpush.bf16.msra.mxu0 0
  %417 = vmatpush.bf16.msra.mxu0 0
  %418 = vmatpush.bf16.msra.mxu0 0
  %419 = vmatpush.bf16.msra.mxu0 %v181
  %420 = vmatpush.bf16.msra.mxu0 %v165
  %421 = vmatmul.bf16.gmra.mxu0 %v216
  %v422 = vpop.f32.mrf.mxu0
  %v423 = vadd.f32 %v52, %v422
  %v424 = vpop.f32.mrf.mxu0
  %425 = vdwg.mxu0
  %v426 = vmul.f32 %v228, 0.5
  %v427 = vmul.f32 %v241, 0.5
  %v428 = vmul.f32 %v254, 0.5
  %v429 = vmul.f32 %v267, 0.5
  %v430 = vmul.f32 %v280, 0.5
  %v431 = vmul.f32 %v293, 0.5
  %v432 = vmul.f32 %v306, 0.5
  %v433 = vmul.f32 %v319, 0.5
  %v434 = vmul.f32 %v332, 0.5
  %v435 = vmul.f32 %v345, 0.5
  %v436 = vmul.f32 %v358, 0.5
  %v437 = vmul.f32 %v371, 0.5
  %v438 = vmul.f32 %v384, 0.5
  %v439 = vmul.f32 %v397, 0.5
  %v440 = vmul.f32 %v410, 0.5
  %v441 = vmul.f32 %v423, 0.5
  %v442 = vtanh.pop %v426
  %v443 = vtanh.pop %v427
  %v444 = vtanh.pop %v428
  %v445 = vtanh.pop %v429
  %v446 = vtanh.pop %v430
  %v447 = vtanh.pop %v431
  %v448 = vtanh.pop %v432
  %v449 = vtanh.pop %v433
  %v450 = vtanh.pop %v434
  %v451 = vtanh.pop %v435
  %v452 = vtanh.pop %v436
  %v453 = vtanh.pop %v437
  %v454 = vtanh.pop %v438
  %v455 = vtanh.pop %v439
  %v456 = vtanh.pop %v440
  %v457 = vtanh.pop %v441
  %v458 = vmul.f32 %v442, 0.5
  %v459 = vmul.f32 %v443, 0.5
  %v460 = vmul.f32 %v444, 0.5
  %v461 = vmul.f32 %v445, 0.5
  %v462 = vmul.f32 %v446, 0.5
  %v463 = vmul.f32 %v447, 0.5
  %v464 = vmul.f32 %v448, 0.5
  %v465 = vmul.f32 %v449, 0.5
  %v466 = vmul.f32 %v450, 0.5
  %v467 = vmul.f32 %v451, 0.5
  %v468 = vmul.f32 %v452, 0.5
  %v469 = vmul.f32 %v453, 0.5
  %v470 = vmul.f32 %v454, 0.5
  %v471 = vmul.f32 %v455, 0.5
  %v472 = vmul.f32 %v456, 0.5
  %v473 = vmul.f32 %v457, 0.5
  %v474 = vadd.f32 %v458, 0.5
  %v475 = vadd.f32 %v459, 0.5
  %v476 = vadd.f32 %v460, 0.5
  %v477 = vadd.f32 %v461, 0.5
  %v478 = vadd.f32 %v462, 0.5
  %v479 = vadd.f32 %v463, 0.5
  %v480 = vadd.f32 %v464, 0.5
  %v481 = vadd.f32 %v465, 0.5
  %v482 = vadd.f32 %v466, 0.5
  %v483 = vadd.f32 %v467, 0.5
  %v484 = vadd.f32 %v468, 0.5
  %v485 = vadd.f32 %v469, 0.5
  %v486 = vadd.f32 %v470, 0.5
  %v487 = vadd.f32 %v471, 0.5
  %v488 = vadd.f32 %v472, 0.5
  %v489 = vadd.f32 %v473, 0.5
  %v490 = vadd.f32 %v474, %v478
  %v491 = vadd.f32 %v475, %v479
  %v492 = vadd.f32 %v476, %v480
  %v493 = vadd.f32 %v477, %v481
  %v494 = vadd.f32 %v490, %v482
  %v495 = vadd.f32 %v491, %v483
  %v496 = vadd.f32 %v492, %v484
  %v497 = vadd.f32 %v493, %v485
  %v498 = vadd.f32 %v494, %v486
  %v499 = vadd.f32 %v495, %v487
  %v500 = vadd.f32 %v496, %v488
  %v501 = vadd.f32 %v497, %v489
  %v502 = vmul.f32 %v498, 0.25
  %v503 = vmul.f32 %v499, 0.25
  %v504 = vmul.f32 %v500, 0.25
  %v505 = vmul.f32 %v501, 0.25
  %506 = vst [vmem:[%s3] sm:$0xff] %v502
  %507 = vst [vmem:[%s3 + $0x8] sm:$0xff] %v503
  %508 = vst [vmem:[%s3 + $0x10] sm:$0xff] %v504
  %509 = vst [vmem:[%s3 + $0x18] sm:$0xff] %v505
  // Predicated region
  $region14: #{lenet5_forward.3} parent=0 // pred_check
    _
  $region15: #{lenet5_forward.3} parent=0 // pred_check_branch
    %511 = sbr.rel (0) target = $region17
  $region16: #{lenet5_forward.3} parent=0 // pred_region
    _
  $region17: #{lenet5_forward.3} parent=0 // pred_fallthru
    _
  // Predicated region
  $region18: #{lenet5_forward.3} parent=0 // pred_check
    _
  $region19: #{lenet5_forward.3} parent=0 // pred_check_branch
    %513 = sbr.rel (0) target = $region21
  $region20: #{lenet5_forward.3} parent=0 // pred_region
    _
  $region21: #{lenet5_forward.3} parent=0 // pred_fallthru
    _

// kernel: lenet5_forward.4
$region0: #{lenet5_forward.4}
  #allocation0 [shape = 'u32[]', space=smem, size = 0x4, offset = 0x4, fixed_abs, tag = 'smem constant byte address 0x4 - core index']
  #allocation1 [shape = 'u32[72,128]{1,0:T(1,128)}', space=vmem, size = 0x9000, scoped, tag = 'internal scratch']
  %s0 = inlined_call_operand.vmem [shape: bf16[16,152], index: 0, kind: input, shape index: {}]
  %s1 = inlined_call_operand.vmem [shape: f32[16,1], index: 1, kind: input, shape index: {}]
  %s2 = inlined_call_operand.vmem [shape: bf16[152,512], index: 2, kind: input, shape index: {}]
  %s3 = inlined_call_operand.vmem [shape: f32[16,128], index: 3, kind: output, shape index: {}]
  %s4 = sld [smem:[#allocation0]]
  $region22: #{lenet5_forward.4} parent=0
    _
  %s6 = ssub.s32 1, %s4
  %s7 = scalar_select 0, %s6, %s4
  // Predicated region
  $region2: #{lenet5_forward.4} parent=0 // pred_check
    _
  $region3: #{lenet5_forward.4} parent=0 // pred_check_branch
    %9 = sbr.rel (0) target = $region5
  $region4: #{lenet5_forward.4} parent=0 // pred_region
    _
  $region5: #{lenet5_forward.4} parent=0 // pred_fallthru
    _
  // Predicated region
  $region6: #{lenet5_forward.4} parent=0 // pred_check
    _
  $region7: #{lenet5_forward.4} parent=0 // pred_check_branch
    %11 = sbr.rel (0) target = $region9
  $region8: #{lenet5_forward.4} parent=0 // pred_region
    _
  $region9: #{lenet5_forward.4} parent=0 // pred_fallthru
    _
  // Predicated region
  $region10: #{lenet5_forward.4} parent=0 // pred_check
    _
  $region11: #{lenet5_forward.4} parent=0 // pred_check_branch
    %13 = sbr.rel (0) target = $region13
  $region12: #{lenet5_forward.4} parent=0 // pred_region
    _
  $region13: #{lenet5_forward.4} parent=0 // pred_fallthru
    _
  %v15 = vld [vmem:[%s0] sm:$0xff]
  %v16 = vld [vmem:[%s0 + $0x8] sm:$0xff]
  %v17 = vld [vmem:[%s2] sm:$0xff]
  %v18 = vld [vmem:[%s2 + $0x8] sm:$0xff]
  %v19 = vld [vmem:[%s2 + $0x10] sm:$0xff]
  %v20 = vld [vmem:[%s2 + $0x18] sm:$0xff]
  %v21 = vld [vmem:[%s2 + $0x20] sm:$0xff]
  %v22 = vld [vmem:[%s2 + $0x28] sm:$0xff]
  %v23 = vld [vmem:[%s2 + $0x30] sm:$0xff]
  %v24 = vld [vmem:[%s2 + $0x38] sm:$0xff]
  %v25 = vld [vmem:[%s2 + $0x40] sm:$0xff]
  %v26 = vld [vmem:[%s2 + $0x48] sm:$0xff]
  %v27 = vld [vmem:[%s2 + $0x50] sm:$0xff]
  %v28 = vld [vmem:[%s2 + $0x58] sm:$0xff]
  %v29 = vld [vmem:[%s2 + $0x60] sm:$0xff]
  %v30 = vld [vmem:[%s2 + $0x68] sm:$0xff]
  %v31 = vld [vmem:[%s2 + $0x70] sm:$0xff]
  %v32 = vld [vmem:[%s2 + $0x78] sm:$0xff]
  %v33 = vld [vmem:[%s2 + $0x80] sm:$0xff]
  %v34 = vld [vmem:[%s2 + $0x88] sm:$0xff]
  %v35 = vld [vmem:[%s2 + $0x90] sm:$0xff]
  %v36 = vld [vmem:[%s2 + $0x98] sm:$0xff]
  %v37 = vld [vmem:[%s2 + $0xa0] sm:$0xff]
  %v38 = vld [vmem:[%s2 + $0xa8] sm:$0xff]
  %v39 = vld [vmem:[%s2 + $0xb0] sm:$0xff]
  %v40 = vld [vmem:[%s2 + $0xb8] sm:$0xff]
  %v41 = vld [vmem:[%s2 + $0xc0] sm:$0xff]
  %v42 = vld [vmem:[%s2 + $0xc8] sm:$0xff]
  %v43 = vld [vmem:[%s2 + $0xd0] sm:$0xff]
  %v44 = vld [vmem:[%s2 + $0xd8] sm:$0xff]
  %v45 = vld [vmem:[%s2 + $0xe0] sm:$0xff]
  %v46 = vld [vmem:[%s2 + $0xe8] sm:$0xff]
  %v47 = vld [vmem:[%s2 + $0xf0] sm:$0xff]
  %v48 = vld [vmem:[%s2 + $0xf8] sm:$0xff]
  %v49 = vld [vmem:[%s2 + $0x100] sm:$0xff]
  %v50 = vld [vmem:[%s2 + $0x108] sm:$0xff]
  %v51 = vld [vmem:[%s2 + $0x110] sm:$0xff]
  %v52 = vld [vmem:[%s2 + $0x118] sm:$0xff]
  %v53 = vld [vmem:[%s2 + $0x120] sm:$0xff]
  %v54 = vld [vmem:[%s2 + $0x128] sm:$0xff]
  %v55 = vld [vmem:[%s1] sm:$0xff]
  %v56 = vld [vmem:[%s1 + $0x8] sm:$0xff]
  %58 = vset.pattern.permute.xlu0 0
  %59 = vperm.xlu0 %58, %v55
  %v60 = vpop.permute.xlu0 %59
  %63 = vset.pattern.permute.xlu0 0
  %64 = vperm.xlu0 %63, %v56
  %v65 = vpop.permute.xlu0 %64
  %v69 = vunpack.c.l.b16 %v15
  %v70 = vunpack.c.h.b16 %v15
  %v71 = vunpack.c.l.b16 %v16
  %v72 = vunpack.c.h.b16 %v16
  %v73 = vpack.c.b16 %v71, %v69
  %v74 = vpack.c.b16 %v72, %v70
  %v114 = vunpack.c.l.b16 %v17
  %v115 = vunpack.c.h.b16 %v17
  %v116 = vunpack.c.l.b16 %v18
  %v117 = vunpack.c.h.b16 %v18
  %v118 = vunpack.c.l.b16 %v19
  %v119 = vunpack.c.h.b16 %v19
  %v120 = vunpack.c.l.b16 %v20
  %v121 = vunpack.c.h.b16 %v20
  %v122 = vunpack.c.l.b16 %v21
  %v123 = vunpack.c.h.b16 %v21
  %v124 = vunpack.c.l.b16 %v22
  %v125 = vunpack.c.h.b16 %v22
  %v126 = vunpack.c.l.b16 %v23
  %v127 = vunpack.c.h.b16 %v23
  %v128 = vunpack.c.l.b16 %v24
  %v129 = vunpack.c.h.b16 %v24
  %v130 = vunpack.c.l.b16 %v25
  %v131 = vunpack.c.h.b16 %v25
  %v132 = vunpack.c.l.b16 %v26
  %v133 = vunpack.c.h.b16 %v26
  %v134 = vunpack.c.l.b16 %v27
  %v135 = vunpack.c.h.b16 %v27
  %v136 = vunpack.c.l.b16 %v28
  %v137 = vunpack.c.h.b16 %v28
  %v138 = vunpack.c.l.b16 %v29
  %v139 = vunpack.c.h.b16 %v29
  %v140 = vunpack.c.l.b16 %v30
  %v141 = vunpack.c.h.b16 %v30
  %v142 = vunpack.c.l.b16 %v31
  %v143 = vunpack.c.h.b16 %v31
  %v144 = vunpack.c.l.b16 %v32
  %v145 = vunpack.c.h.b16 %v32
  %v146 = vunpack.c.l.b16 %v33
  %v147 = vunpack.c.h.b16 %v33
  %v148 = vunpack.c.l.b16 %v34
  %v149 = vunpack.c.h.b16 %v34
  %v150 = vunpack.c.l.b16 %v35
  %v151 = vunpack.c.h.b16 %v35
  %v152 = vunpack.c.l.b16 %v36
  %v153 = vunpack.c.h.b16 %v36
  %v154 = vunpack.c.l.b16 %v37
  %v155 = vunpack.c.h.b16 %v37
  %v156 = vunpack.c.l.b16 %v38
  %v157 = vunpack.c.h.b16 %v38
  %v158 = vunpack.c.l.b16 %v39
  %v159 = vunpack.c.h.b16 %v39
  %v160 = vunpack.c.l.b16 %v40
  %v161 = vunpack.c.h.b16 %v40
  %v162 = vunpack.c.l.b16 %v41
  %v163 = vunpack.c.h.b16 %v41
  %v164 = vunpack.c.l.b16 %v42
  %v165 = vunpack.c.h.b16 %v42
  %v166 = vunpack.c.l.b16 %v43
  %v167 = vunpack.c.h.b16 %v43
  %v168 = vunpack.c.l.b16 %v44
  %v169 = vunpack.c.h.b16 %v44
  %v170 = vunpack.c.l.b16 %v45
  %v171 = vunpack.c.h.b16 %v45
  %v172 = vunpack.c.l.b16 %v46
  %v173 = vunpack.c.h.b16 %v46
  %v174 = vunpack.c.l.b16 %v47
  %v175 = vunpack.c.h.b16 %v47
  %v176 = vunpack.c.l.b16 %v48
  %v177 = vunpack.c.h.b16 %v48
  %v178 = vunpack.c.l.b16 %v49
  %v179 = vunpack.c.h.b16 %v49
  %v180 = vunpack.c.l.b16 %v50
  %v181 = vunpack.c.h.b16 %v50
  %v182 = vunpack.c.l.b16 %v51
  %v183 = vunpack.c.h.b16 %v51
  %v184 = vunpack.c.l.b16 %v52
  %v185 = vunpack.c.h.b16 %v52
  %v186 = vunpack.c.l.b16 %v53
  %v187 = vunpack.c.h.b16 %v53
  %v188 = vunpack.c.l.b16 %v54
  %v189 = vunpack.c.h.b16 %v54
  %v190 = vpack.c.b16 %v118, %v114
  %v191 = vpack.c.b16 %v119, %v115
  %v192 = vpack.c.b16 %v120, %v116
  %v193 = vpack.c.b16 %v121, %v117
  %v194 = vpack.c.b16 %v126, %v122
  %v195 = vpack.c.b16 %v127, %v123
  %v196 = vpack.c.b16 %v128, %v124
  %v197 = vpack.c.b16 %v129, %v125
  %v198 = vpack.c.b16 %v134, %v130
  %v199 = vpack.c.b16 %v135, %v131
  %v200 = vpack.c.b16 %v136, %v132
  %v201 = vpack.c.b16 %v137, %v133
  %v202 = vpack.c.b16 %v142, %v138
  %v203 = vpack.c.b16 %v143, %v139
  %v204 = vpack.c.b16 %v144, %v140
  %v205 = vpack.c.b16 %v145, %v141
  %v206 = vpack.c.b16 %v150, %v146
  %v207 = vpack.c.b16 %v151, %v147
  %v208 = vpack.c.b16 %v152, %v148
  %v209 = vpack.c.b16 %v153, %v149
  %v210 = vpack.c.b16 %v158, %v154
  %v211 = vpack.c.b16 %v159, %v155
  %v212 = vpack.c.b16 %v160, %v156
  %v213 = vpack.c.b16 %v161, %v157
  %v214 = vpack.c.b16 %v166, %v162
  %v215 = vpack.c.b16 %v167, %v163
  %v216 = vpack.c.b16 %v168, %v164
  %v217 = vpack.c.b16 %v169, %v165
  %v218 = vpack.c.b16 %v174, %v170
  %v219 = vpack.c.b16 %v175, %v171
  %v220 = vpack.c.b16 %v176, %v172
  %v221 = vpack.c.b16 %v177, %v173
  %v222 = vpack.c.b16 %v182, %v178
  %v223 = vpack.c.b16 %v183, %v179
  %v224 = vpack.c.b16 %v184, %v180
  %v225 = vpack.c.b16 %v185, %v181
  %v226 = vpack.c.b16 %v186, %v186
  %v227 = vpack.c.b16 %v187, %v187
  %v228 = vpack.c.b16 %v188, %v188
  %v229 = vpack.c.b16 %v189, %v189
  %vm266 = vcmask 195584
  %v268 = vsel %vm266, %v74, 0
  %vm270 = vcmask 1043456
  %v272 = vsel %vm270, %v226, 0
  %v275 = vsel %vm270, %v227, 0
  %v278 = vsel %vm270, %v228, 0
  %v281 = vsel %vm270, %v229, 0
  %283 = vmatpush.bf16.msra.mxu0 %v218
  %284 = vmatpush.bf16.msra.mxu0 %v214
  %285 = vmatpush.bf16.msra.mxu0 %v210
  %286 = vmatpush.bf16.msra.mxu0 %v206
  %287 = vmatpush.bf16.msra.mxu0 %v202
  %288 = vmatpush.bf16.msra.mxu0 %v198
  %289 = vmatpush.bf16.msra.mxu0 %v194
  %290 = vmatpush.bf16.msra.mxu0 %v190
  %291 = vmatmul.bf16.gmra.mxu0 %v73
  %v292 = vpop.f32.mrf.mxu0
  %v293 = vadd.f32 %v60, %v292
  %v294 = vpop.f32.mrf.mxu0
  %v295 = vadd.f32 %v65, %v294
  %296 = vdwg.mxu0
  %297 = vmatpush.bf16.msra.mxu0 0
  %298 = vmatpush.bf16.msra.mxu0 0
  %299 = vmatpush.bf16.msra.mxu0 0
  %300 = vmatpush.bf16.msra.mxu0 0
  %301 = vmatpush.bf16.msra.mxu0 0
  %302 = vmatpush.bf16.msra.mxu0 0
  %303 = vmatpush.bf16.msra.mxu0 %v272
  %304 = vmatpush.bf16.msra.mxu0 %v222
  %305 = vmatmul.bf16.gmra.mxu0 %v268
  %v306 = vpop.f32.mrf.mxu0
  %v307 = vadd.f32 %v293, %v306
  %v308 = vpop.f32.mrf.mxu0
  %v309 = vadd.f32 %v295, %v308
  %310 = vdwg.mxu0
  %311 = vmatpush.bf16.msra.mxu0 %v219
  %312 = vmatpush.bf16.msra.mxu0 %v215
  %313 = vmatpush.bf16.msra.mxu0 %v211
  %314 = vmatpush.bf16.msra.mxu0 %v207
  %315 = vmatpush.bf16.msra.mxu0 %v203
  %316 = vmatpush.bf16.msra.mxu0 %v199
  %317 = vmatpush.bf16.msra.mxu0 %v195
  %318 = vmatpush.bf16.msra.mxu0 %v191
  %319 = vmatmul.bf16.gmra.mxu0 %v73
  %v320 = vpop.f32.mrf.mxu0
  %v321 = vadd.f32 %v60, %v320
  %v322 = vpop.f32.mrf.mxu0
  %v323 = vadd.f32 %v65, %v322
  %324 = vdwg.mxu0
  %325 = vmatpush.bf16.msra.mxu0 0
  %326 = vmatpush.bf16.msra.mxu0 0
  %327 = vmatpush.bf16.msra.mxu0 0
  %328 = vmatpush.bf16.msra.mxu0 0
  %329 = vmatpush.bf16.msra.mxu0 0
  %330 = vmatpush.bf16.msra.mxu0 0
  %331 = vmatpush.bf16.msra.mxu0 %v275
  %332 = vmatpush.bf16.msra.mxu0 %v223
  %333 = vmatmul.bf16.gmra.mxu0 %v268
  %v334 = vpop.f32.mrf.mxu0
  %v335 = vadd.f32 %v321, %v334
  %v336 = vpop.f32.mrf.mxu0
  %v337 = vadd.f32 %v323, %v336
  %338 = vdwg.mxu0
  %339 = vmatpush.bf16.msra.mxu0 %v220
  %340 = vmatpush.bf16.msra.mxu0 %v216
  %341 = vmatpush.bf16.msra.mxu0 %v212
  %342 = vmatpush.bf16.msra.mxu0 %v208
  %343 = vmatpush.bf16.msra.mxu0 %v204
  %344 = vmatpush.bf16.msra.mxu0 %v200
  %345 = vmatpush.bf16.msra.mxu0 %v196
  %346 = vmatpush.bf16.msra.mxu0 %v192
  %347 = vmatmul.bf16.gmra.mxu0 %v73
  %v348 = vpop.f32.mrf.mxu0
  %v349 = vadd.f32 %v60, %v348
  %v350 = vpop.f32.mrf.mxu0
  %v351 = vadd.f32 %v65, %v350
  %352 = vdwg.mxu0
  %353 = vmatpush.bf16.msra.mxu0 0
  %354 = vmatpush.bf16.msra.mxu0 0
  %355 = vmatpush.bf16.msra.mxu0 0
  %356 = vmatpush.bf16.msra.mxu0 0
  %357 = vmatpush.bf16.msra.mxu0 0
  %358 = vmatpush.bf16.msra.mxu0 0
  %359 = vmatpush.bf16.msra.mxu0 %v278
  %360 = vmatpush.bf16.msra.mxu0 %v224
  %361 = vmatmul.bf16.gmra.mxu0 %v268
  %v362 = vpop.f32.mrf.mxu0
  %v363 = vadd.f32 %v349, %v362
  %v364 = vpop.f32.mrf.mxu0
  %v365 = vadd.f32 %v351, %v364
  %366 = vdwg.mxu0
  %367 = vmatpush.bf16.msra.mxu0 %v221
  %368 = vmatpush.bf16.msra.mxu0 %v217
  %369 = vmatpush.bf16.msra.mxu0 %v213
  %370 = vmatpush.bf16.msra.mxu0 %v209
  %371 = vmatpush.bf16.msra.mxu0 %v205
  %372 = vmatpush.bf16.msra.mxu0 %v201
  %373 = vmatpush.bf16.msra.mxu0 %v197
  %374 = vmatpush.bf16.msra.mxu0 %v193
  %375 = vmatmul.bf16.gmra.mxu0 %v73
  %v376 = vpop.f32.mrf.mxu0
  %v377 = vadd.f32 %v60, %v376
  %v378 = vpop.f32.mrf.mxu0
  %v379 = vadd.f32 %v65, %v378
  %380 = vdwg.mxu0
  %381 = vmatpush.bf16.msra.mxu0 0
  %382 = vmatpush.bf16.msra.mxu0 0
  %383 = vmatpush.bf16.msra.mxu0 0
  %384 = vmatpush.bf16.msra.mxu0 0
  %385 = vmatpush.bf16.msra.mxu0 0
  %386 = vmatpush.bf16.msra.mxu0 0
  %387 = vmatpush.bf16.msra.mxu0 %v281
  %388 = vmatpush.bf16.msra.mxu0 %v225
  %389 = vmatmul.bf16.gmra.mxu0 %v268
  %v390 = vpop.f32.mrf.mxu0
  %v391 = vadd.f32 %v377, %v390
  %v392 = vpop.f32.mrf.mxu0
  %v393 = vadd.f32 %v379, %v392
  %394 = vdwg.mxu0
  %v395 = vmul.f32 %v307, 0.5
  %v396 = vmul.f32 %v335, 0.5
  %v397 = vmul.f32 %v363, 0.5
  %v398 = vmul.f32 %v391, 0.5
  %v399 = vmul.f32 %v309, 0.5
  %v400 = vmul.f32 %v337, 0.5
  %v401 = vmul.f32 %v365, 0.5
  %v402 = vmul.f32 %v393, 0.5
  %v403 = vtanh.pop %v395
  %v404 = vtanh.pop %v396
  %v405 = vtanh.pop %v397
  %v406 = vtanh.pop %v398
  %v407 = vtanh.pop %v399
  %v408 = vtanh.pop %v400
  %v409 = vtanh.pop %v401
  %v410 = vtanh.pop %v402
  %v411 = vmul.f32 %v403, 0.5
  %v412 = vmul.f32 %v404, 0.5
  %v413 = vmul.f32 %v405, 0.5
  %v414 = vmul.f32 %v406, 0.5
  %v415 = vmul.f32 %v407, 0.5
  %v416 = vmul.f32 %v408, 0.5
  %v417 = vmul.f32 %v409, 0.5
  %v418 = vmul.f32 %v410, 0.5
  %v419 = vadd.f32 %v411, 0.5
  %v420 = vadd.f32 %v412, 0.5
  %v421 = vadd.f32 %v413, 0.5
  %v422 = vadd.f32 %v414, 0.5
  %v423 = vadd.f32 %v415, 0.5
  %v424 = vadd.f32 %v416, 0.5
  %v425 = vadd.f32 %v417, 0.5
  %v426 = vadd.f32 %v418, 0.5
  %v427 = vadd.f32 %v419, %v420
  %v428 = vadd.f32 %v423, %v424
  %v429 = vadd.f32 %v427, %v421
  %v430 = vadd.f32 %v428, %v425
  %v431 = vadd.f32 %v429, %v422
  %v432 = vadd.f32 %v430, %v426
  %v433 = vmul.f32 %v431, 0.25
  %v434 = vmul.f32 %v432, 0.25
  %435 = vst [vmem:[%s3] sm:$0xff] %v433
  %436 = vst [vmem:[%s3 + $0x8] sm:$0xff] %v434
  // Predicated region
  $region14: #{lenet5_forward.4} parent=0 // pred_check
    _
  $region15: #{lenet5_forward.4} parent=0 // pred_check_branch
    %438 = sbr.rel (0) target = $region17
  $region16: #{lenet5_forward.4} parent=0 // pred_region
    _
  $region17: #{lenet5_forward.4} parent=0 // pred_fallthru
    _
  // Predicated region
  $region18: #{lenet5_forward.4} parent=0 // pred_check
    _
  $region19: #{lenet5_forward.4} parent=0 // pred_check_branch
    %440 = sbr.rel (0) target = $region21
  $region20: #{lenet5_forward.4} parent=0 // pred_region
    _
  $region21: #{lenet5_forward.4} parent=0 // pred_fallthru
    _

// kernel: lenet5_forward.5
$region0: #{lenet5_forward.5}
  #allocation0 [shape = 'u32[]', space=smem, size = 0x4, offset = 0x4, fixed_abs, tag = 'smem constant byte address 0x4 - core index']
  #allocation1 [shape = 'u32[72,128]{1,0:T(1,128)}', space=vmem, size = 0x9000, scoped, tag = 'internal scratch']
  %s0 = inlined_call_operand.vmem [shape: f32[8,400], index: 0, kind: input, shape index: {}]
  %s1 = inlined_call_operand.vmem [shape: bf16[400,128], index: 1, kind: input, shape index: {}]
  %s2 = inlined_call_operand.vmem [shape: f32[1,128], index: 2, kind: input, shape index: {}]
  %s3 = inlined_call_operand.vmem [shape: bf16[128,128], index: 3, kind: input, shape index: {}]
  %s4 = inlined_call_operand.vmem [shape: f32[1,128], index: 4, kind: input, shape index: {}]
  %s5 = inlined_call_operand.vmem [shape: bf16[128,128], index: 5, kind: input, shape index: {}]
  %s6 = inlined_call_operand.vmem [shape: f32[1,128], index: 6, kind: input, shape index: {}]
  %s7 = inlined_call_operand.vmem [shape: f32[8,128], index: 7, kind: output, shape index: {}]
  %s8 = sld [smem:[#allocation0]]
  $region38: #{lenet5_forward.5} parent=0
    _
  %s10 = ssub.s32 1, %s8
  %s11 = scalar_select 0, %s10, %s8
  // Predicated region
  $region2: #{lenet5_forward.5} parent=0 // pred_check
    _
  $region3: #{lenet5_forward.5} parent=0 // pred_check_branch
    %13 = sbr.rel (0) target = $region5
  $region4: #{lenet5_forward.5} parent=0 // pred_region
    _
  $region5: #{lenet5_forward.5} parent=0 // pred_fallthru
    _
  // Predicated region
  $region6: #{lenet5_forward.5} parent=0 // pred_check
    _
  $region7: #{lenet5_forward.5} parent=0 // pred_check_branch
    %15 = sbr.rel (0) target = $region9
  $region8: #{lenet5_forward.5} parent=0 // pred_region
    _
  $region9: #{lenet5_forward.5} parent=0 // pred_fallthru
    _
  // Predicated region
  $region10: #{lenet5_forward.5} parent=0 // pred_check
    _
  $region11: #{lenet5_forward.5} parent=0 // pred_check_branch
    %17 = sbr.rel (0) target = $region13
  $region12: #{lenet5_forward.5} parent=0 // pred_region
    _
  $region13: #{lenet5_forward.5} parent=0 // pred_fallthru
    _
  // Predicated region
  $region14: #{lenet5_forward.5} parent=0 // pred_check
    _
  $region15: #{lenet5_forward.5} parent=0 // pred_check_branch
    %19 = sbr.rel (0) target = $region17
  $region16: #{lenet5_forward.5} parent=0 // pred_region
    _
  $region17: #{lenet5_forward.5} parent=0 // pred_fallthru
    _
  // Predicated region
  $region18: #{lenet5_forward.5} parent=0 // pred_check
    _
  $region19: #{lenet5_forward.5} parent=0 // pred_check_branch
    %21 = sbr.rel (0) target = $region21
  $region20: #{lenet5_forward.5} parent=0 // pred_region
    _
  $region21: #{lenet5_forward.5} parent=0 // pred_fallthru
    _
  // Predicated region
  $region22: #{lenet5_forward.5} parent=0 // pred_check
    _
  $region23: #{lenet5_forward.5} parent=0 // pred_check_branch
    %23 = sbr.rel (0) target = $region25
  $region24: #{lenet5_forward.5} parent=0 // pred_region
    _
  $region25: #{lenet5_forward.5} parent=0 // pred_fallthru
    _
  // Predicated region
  $region26: #{lenet5_forward.5} parent=0 // pred_check
    _
  $region27: #{lenet5_forward.5} parent=0 // pred_check_branch
    %25 = sbr.rel (0) target = $region29
  $region28: #{lenet5_forward.5} parent=0 // pred_region
    _
  $region29: #{lenet5_forward.5} parent=0 // pred_fallthru
    _
  %v27 = vld [vmem:[%s0] sm:$0xff]
  %v28 = vld [vmem:[%s0 + $0x8] sm:$0xff]
  %v29 = vld [vmem:[%s0 + $0x10] sm:$0xff]
  %v30 = vld [vmem:[%s0 + $0x18] sm:$0xff]
  %v31 = vpack.c.bf16 %v27, %v27
  %v32 = vpack.c.bf16 %v28, %v28
  %v33 = vpack.c.bf16 %v29, %v29
  %v34 = vpack.c.bf16 %v30, %v30
  %v35 = vld [vmem:[%s1] sm:$0xf]
  %v36 = vld [vmem:[%s1 + $0x4] sm:$0xf]
  %v37 = vld [vmem:[%s1 + $0x8] sm:$0xf]
  %v38 = vld [vmem:[%s1 + $0xc] sm:$0xf]
  %v39 = vld [vmem:[%s1 + $0x10] sm:$0xf]
  %v40 = vld [vmem:[%s1 + $0x14] sm:$0xf]
  %v41 = vld [vmem:[%s1 + $0x18] sm:$0xf]
  %v42 = vld [vmem:[%s1 + $0x1c] sm:$0xf]
  %v43 = vld [vmem:[%s1 + $0x20] sm:$0xf]
  %v44 = vld [vmem:[%s1 + $0x24] sm:$0xf]
  %v45 = vld [vmem:[%s1 + $0x28] sm:$0xf]
  %v46 = vld [vmem:[%s1 + $0x2c] sm:$0xf]
  %v47 = vld [vmem:[%s1 + $0x30] sm:$0xf]
  %v48 = vld [vmem:[%s1 + $0x34] sm:$0xf]
  %v49 = vld [vmem:[%s1 + $0x38] sm:$0xf]
  %v50 = vld [vmem:[%s1 + $0x3c] sm:$0xf]
  %v51 = vld [vmem:[%s1 + $0x40] sm:$0xf]
  %v52 = vld [vmem:[%s1 + $0x44] sm:$0xf]
  %v53 = vld [vmem:[%s1 + $0x48] sm:$0xf]
  %v54 = vld [vmem:[%s1 + $0x4c] sm:$0xf]
  %v55 = vld [vmem:[%s1 + $0x50] sm:$0xf]
  %v56 = vld [vmem:[%s1 + $0x54] sm:$0xf]
  %v57 = vld [vmem:[%s1 + $0x58] sm:$0xf]
  %v58 = vld [vmem:[%s1 + $0x5c] sm:$0xf]
  %v59 = vld [vmem:[%s1 + $0x60] sm:$0xf]
  %v60 = vld [vmem:[%s1 + $0x64] sm:$0xf]
  %v61 = vld [vmem:[%s1 + $0x68] sm:$0xf]
  %v62 = vld [vmem:[%s1 + $0x6c] sm:$0xf]
  %v63 = vld [vmem:[%s1 + $0x70] sm:$0xf]
  %v64 = vld [vmem:[%s1 + $0x74] sm:$0xf]
  %v65 = vld [vmem:[%s1 + $0x78] sm:$0xf]
  %v66 = vld [vmem:[%s1 + $0x7c] sm:$0xf]
  %v67 = vld [vmem:[%s1 + $0x80] sm:$0xf]
  %v68 = vld [vmem:[%s1 + $0x84] sm:$0xf]
  %v69 = vld [vmem:[%s1 + $0x88] sm:$0xf]
  %v70 = vld [vmem:[%s1 + $0x8c] sm:$0xf]
  %v71 = vld [vmem:[%s1 + $0x90] sm:$0xf]
  %v72 = vld [vmem:[%s1 + $0x94] sm:$0xf]
  %v73 = vld [vmem:[%s1 + $0x98] sm:$0xf]
  %v74 = vld [vmem:[%s1 + $0x9c] sm:$0xf]
  %v75 = vld [vmem:[%s1 + $0xa0] sm:$0xf]
  %v76 = vld [vmem:[%s1 + $0xa4] sm:$0xf]
  %v77 = vld [vmem:[%s1 + $0xa8] sm:$0xf]
  %v78 = vld [vmem:[%s1 + $0xac] sm:$0xf]
  %v79 = vld [vmem:[%s1 + $0xb0] sm:$0xf]
  %v80 = vld [vmem:[%s1 + $0xb4] sm:$0xf]
  %v81 = vld [vmem:[%s1 + $0xb8] sm:$0xf]
  %v82 = vld [vmem:[%s1 + $0xbc] sm:$0xf]
  %v83 = vld [vmem:[%s1 + $0xc0] sm:$0xf]
  %v84 = vld [vmem:[%s1 + $0xc4] sm:$0xf]
  %v85 = vld [vmem:[%s2] sm:$0x1]
  %v87 = vperm.slane %v85, 0
  %v139 = vunpack.c.l.b16 %v35
  %v140 = vunpack.c.l.b16 %v36
  %v141 = vunpack.c.l.b16 %v37
  %v142 = vunpack.c.l.b16 %v38
  %v143 = vunpack.c.l.b16 %v39
  %v144 = vunpack.c.l.b16 %v40
  %v145 = vunpack.c.l.b16 %v41
  %v146 = vunpack.c.l.b16 %v42
  %v147 = vunpack.c.l.b16 %v43
  %v148 = vunpack.c.l.b16 %v44
  %v149 = vunpack.c.l.b16 %v45
  %v150 = vunpack.c.l.b16 %v46
  %v151 = vunpack.c.l.b16 %v47
  %v152 = vunpack.c.l.b16 %v48
  %v153 = vunpack.c.l.b16 %v49
  %v154 = vunpack.c.l.b16 %v50
  %v155 = vunpack.c.l.b16 %v51
  %v156 = vunpack.c.l.b16 %v52
  %v157 = vunpack.c.l.b16 %v53
  %v158 = vunpack.c.l.b16 %v54
  %v159 = vunpack.c.l.b16 %v55
  %v160 = vunpack.c.l.b16 %v56
  %v161 = vunpack.c.l.b16 %v57
  %v162 = vunpack.c.l.b16 %v58
  %v163 = vunpack.c.l.b16 %v59
  %v164 = vunpack.c.l.b16 %v60
  %v165 = vunpack.c.l.b16 %v61
  %v166 = vunpack.c.l.b16 %v62
  %v167 = vunpack.c.l.b16 %v63
  %v168 = vunpack.c.l.b16 %v64
  %v169 = vunpack.c.l.b16 %v65
  %v170 = vunpack.c.l.b16 %v66
  %v171 = vunpack.c.l.b16 %v67
  %v172 = vunpack.c.l.b16 %v68
  %v173 = vunpack.c.l.b16 %v69
  %v174 = vunpack.c.l.b16 %v70
  %v175 = vunpack.c.l.b16 %v71
  %v176 = vunpack.c.l.b16 %v72
  %v177 = vunpack.c.l.b16 %v73
  %v178 = vunpack.c.l.b16 %v74
  %v179 = vunpack.c.l.b16 %v75
  %v180 = vunpack.c.l.b16 %v76
  %v181 = vunpack.c.l.b16 %v77
  %v182 = vunpack.c.l.b16 %v78
  %v183 = vunpack.c.l.b16 %v79
  %v184 = vunpack.c.l.b16 %v80
  %v185 = vunpack.c.l.b16 %v81
  %v186 = vunpack.c.l.b16 %v82
  %v187 = vunpack.c.l.b16 %v83
  %v188 = vunpack.c.l.b16 %v84
  %v189 = vpack.c.b16 %v140, %v139
  %v190 = vpack.c.b16 %v142, %v141
  %v191 = vpack.c.b16 %v144, %v143
  %v192 = vpack.c.b16 %v146, %v145
  %v193 = vpack.c.b16 %v148, %v147
  %v194 = vpack.c.b16 %v150, %v149
  %v195 = vpack.c.b16 %v152, %v151
  %v196 = vpack.c.b16 %v154, %v153
  %v197 = vpack.c.b16 %v156, %v155
  %v198 = vpack.c.b16 %v158, %v157
  %v199 = vpack.c.b16 %v160, %v159
  %v200 = vpack.c.b16 %v162, %v161
  %v201 = vpack.c.b16 %v164, %v163
  %v202 = vpack.c.b16 %v166, %v165
  %v203 = vpack.c.b16 %v168, %v167
  %v204 = vpack.c.b16 %v170, %v169
  %v205 = vpack.c.b16 %v172, %v171
  %v206 = vpack.c.b16 %v174, %v173
  %v207 = vpack.c.b16 %v176, %v175
  %v208 = vpack.c.b16 %v178, %v177
  %v209 = vpack.c.b16 %v180, %v179
  %v210 = vpack.c.b16 %v182, %v181
  %v211 = vpack.c.b16 %v184, %v183
  %v212 = vpack.c.b16 %v186, %v185
  %v213 = vpack.c.b16 %v188, %v187
  %vm239 = vcmask 130048
  %v241 = vsel %vm239, %v34, 0
  %243 = vmatpush.bf16.msra.mxu0 %v196
  %244 = vmatpush.bf16.msra.mxu0 %v195
  %245 = vmatpush.bf16.msra.mxu0 %v194
  %246 = vmatpush.bf16.msra.mxu0 %v193
  %247 = vmatpush.bf16.msra.mxu0 %v192
  %248 = vmatpush.bf16.msra.mxu0 %v191
  %249 = vmatpush.bf16.msra.mxu0 %v190
  %250 = vmatpush.bf16.msra.mxu0 %v189
  %251 = vmatmul.bf16.gmra.mxu0 %v31
  %v252 = vpop.f32.mrf.mxu0
  %v253 = vadd.f32 %v87, %v252
  %v254 = vpop.f32.mrf.mxu0
  %255 = vdwg.mxu0
  %256 = vmatpush.bf16.msra.mxu0 %v204
  %257 = vmatpush.bf16.msra.mxu0 %v203
  %258 = vmatpush.bf16.msra.mxu0 %v202
  %259 = vmatpush.bf16.msra.mxu0 %v201
  %260 = vmatpush.bf16.msra.mxu0 %v200
  %261 = vmatpush.bf16.msra.mxu0 %v199
  %262 = vmatpush.bf16.msra.mxu0 %v198
  %263 = vmatpush.bf16.msra.mxu0 %v197
  %264 = vmatmul.bf16.gmra.mxu0 %v32
  %v265 = vpop.f32.mrf.mxu0
  %v266 = vadd.f32 %v253, %v265
  %v267 = vpop.f32.mrf.mxu0
  %268 = vdwg.mxu0
  %269 = vmatpush.bf16.msra.mxu0 %v212
  %270 = vmatpush.bf16.msra.mxu0 %v211
  %271 = vmatpush.bf16.msra.mxu0 %v210
  %272 = vmatpush.bf16.msra.mxu0 %v209
  %273 = vmatpush.bf16.msra.mxu0 %v208
  %274 = vmatpush.bf16.msra.mxu0 %v207
  %275 = vmatpush.bf16.msra.mxu0 %v206
  %276 = vmatpush.bf16.msra.mxu0 %v205
  %277 = vmatmul.bf16.gmra.mxu0 %v33
  %v278 = vpop.f32.mrf.mxu0
  %v279 = vadd.f32 %v266, %v278
  %v280 = vpop.f32.mrf.mxu0
  %281 = vdwg.mxu0
  %282 = vmatpush.bf16.msra.mxu0 0
  %283 = vmatpush.bf16.msra.mxu0 0
  %284 = vmatpush.bf16.msra.mxu0 0
  %285 = vmatpush.bf16.msra.mxu0 0
  %286 = vmatpush.bf16.msra.mxu0 0
  %287 = vmatpush.bf16.msra.mxu0 0
  %288 = vmatpush.bf16.msra.mxu0 0
  %289 = vmatpush.bf16.msra.mxu0 %v213
  %290 = vmatmul.bf16.gmra.mxu0 %v241
  %v291 = vpop.f32.mrf.mxu0
  %v292 = vadd.f32 %v279, %v291
  %v293 = vpop.f32.mrf.mxu0
  %294 = vdwg.mxu0
  %v295 = vmul.f32 %v292, 0.5
  %v296 = vtanh.pop %v295
  %v297 = vmul.f32 %v296, 0.5
  %v298 = vadd.f32 %v297, 0.5
  %v299 = vpack.c.bf16 %v298, %v298
  %v300 = vld [vmem:[%s3] sm:$0xf]
  %v301 = vld [vmem:[%s3 + $0x4] sm:$0xf]
  %v302 = vld [vmem:[%s3 + $0x8] sm:$0xf]
  %v303 = vld [vmem:[%s3 + $0xc] sm:$0xf]
  %v304 = vld [vmem:[%s3 + $0x10] sm:$0xf]
  %v305 = vld [vmem:[%s3 + $0x14] sm:$0xf]
  %v306 = vld [vmem:[%s3 + $0x18] sm:$0xf]
  %v307 = vld [vmem:[%s3 + $0x1c] sm:$0xf]
  %v308 = vld [vmem:[%s3 + $0x20] sm:$0xf]
  %v309 = vld [vmem:[%s3 + $0x24] sm:$0xf]
  %v310 = vld [vmem:[%s3 + $0x28] sm:$0xf]
  %v311 = vld [vmem:[%s3 + $0x2c] sm:$0xf]
  %v312 = vld [vmem:[%s3 + $0x30] sm:$0xf]
  %v313 = vld [vmem:[%s3 + $0x34] sm:$0xf]
  %v314 = vld [vmem:[%s3 + $0x38] sm:$0xf]
  %v315 = vld [vmem:[%s3 + $0x3c] sm:$0xf]
  %v316 = vld [vmem:[%s4] sm:$0x1]
  %v318 = vperm.slane %v316, 0
  %v336 = vunpack.c.l.b16 %v300
  %v337 = vunpack.c.l.b16 %v301
  %v338 = vunpack.c.l.b16 %v302
  %v339 = vunpack.c.l.b16 %v303
  %v340 = vunpack.c.l.b16 %v304
  %v341 = vunpack.c.l.b16 %v305
  %v342 = vunpack.c.l.b16 %v306
  %v343 = vunpack.c.l.b16 %v307
  %v344 = vunpack.c.l.b16 %v308
  %v345 = vunpack.c.l.b16 %v309
  %v346 = vunpack.c.l.b16 %v310
  %v347 = vunpack.c.l.b16 %v311
  %v348 = vunpack.c.l.b16 %v312
  %v349 = vunpack.c.l.b16 %v313
  %v350 = vunpack.c.l.b16 %v314
  %v351 = vunpack.c.l.b16 %v315
  %v352 = vpack.c.b16 %v337, %v336
  %v353 = vpack.c.b16 %v339, %v338
  %v354 = vpack.c.b16 %v341, %v340
  %v355 = vpack.c.b16 %v343, %v342
  %v356 = vpack.c.b16 %v345, %v344
  %v357 = vpack.c.b16 %v347, %v346
  %v358 = vpack.c.b16 %v349, %v348
  %v359 = vpack.c.b16 %v351, %v350
  %368 = vmatpush.bf16.msra.mxu0 %v359
  %369 = vmatpush.bf16.msra.mxu0 %v358
  %370 = vmatpush.bf16.msra.mxu0 %v357
  %371 = vmatpush.bf16.msra.mxu0 %v356
  %372 = vmatpush.bf16.msra.mxu0 %v355
  %373 = vmatpush.bf16.msra.mxu0 %v354
  %374 = vmatpush.bf16.msra.mxu0 %v353
  %375 = vmatpush.bf16.msra.mxu0 %v352
  %376 = vmatmul.bf16.gmra.mxu0 %v299
  %v377 = vpop.f32.mrf.mxu0
  %v378 = vadd.f32 %v318, %v377
  %v379 = vpop.f32.mrf.mxu0
  %380 = vdwg.mxu0
  %v381 = vmul.f32 %v378, 0.5
  %v382 = vtanh.pop %v381
  %v383 = vmul.f32 %v382, 0.5
  %v384 = vadd.f32 %v383, 0.5
  %v385 = vpack.c.bf16 %v384, %v384
  %v386 = vld [vmem:[%s5] sm:$0xf]
  %v387 = vld [vmem:[%s5 + $0x4] sm:$0xf]
  %v388 = vld [vmem:[%s5 + $0x8] sm:$0xf]
  %v389 = vld [vmem:[%s5 + $0xc] sm:$0xf]
  %v390 = vld [vmem:[%s5 + $0x10] sm:$0xf]
  %v391 = vld [vmem:[%s5 + $0x14] sm:$0xf]
  %v392 = vld [vmem:[%s5 + $0x18] sm:$0xf]
  %v393 = vld [vmem:[%s5 + $0x1c] sm:$0xf]
  %v394 = vld [vmem:[%s5 + $0x20] sm:$0xf]
  %v395 = vld [vmem:[%s5 + $0x24] sm:$0xf]
  %v396 = vld [vmem:[%s5 + $0x28] sm:$0xf]
  %v397 = vld [vmem:[%s5 + $0x2c] sm:$0xf]
  %v398 = vld [vmem:[%s5 + $0x30] sm:$0xf]
  %v399 = vld [vmem:[%s5 + $0x34] sm:$0xf]
  %v400 = vld [vmem:[%s5 + $0x38] sm:$0xf]
  %v401 = vld [vmem:[%s5 + $0x3c] sm:$0xf]
  %v402 = vld [vmem:[%s6] sm:$0x1]
  %v404 = vperm.slane %v402, 0
  %v422 = vunpack.c.l.b16 %v386
  %v423 = vunpack.c.l.b16 %v387
  %v424 = vunpack.c.l.b16 %v388
  %v425 = vunpack.c.l.b16 %v389
  %v426 = vunpack.c.l.b16 %v390
  %v427 = vunpack.c.l.b16 %v391
  %v428 = vunpack.c.l.b16 %v392
  %v429 = vunpack.c.l.b16 %v393
  %v430 = vunpack.c.l.b16 %v394
  %v431 = vunpack.c.l.b16 %v395
  %v432 = vunpack.c.l.b16 %v396
  %v433 = vunpack.c.l.b16 %v397
  %v434 = vunpack.c.l.b16 %v398
  %v435 = vunpack.c.l.b16 %v399
  %v436 = vunpack.c.l.b16 %v400
  %v437 = vunpack.c.l.b16 %v401
  %v438 = vpack.c.b16 %v423, %v422
  %v439 = vpack.c.b16 %v425, %v424
  %v440 = vpack.c.b16 %v427, %v426
  %v441 = vpack.c.b16 %v429, %v428
  %v442 = vpack.c.b16 %v431, %v430
  %v443 = vpack.c.b16 %v433, %v432
  %v444 = vpack.c.b16 %v435, %v434
  %v445 = vpack.c.b16 %v437, %v436
  %454 = vmatpush.bf16.msra.mxu0 %v445
  %455 = vmatpush.bf16.msra.mxu0 %v444
  %456 = vmatpush.bf16.msra.mxu0 %v443
  %457 = vmatpush.bf16.msra.mxu0 %v442
  %458 = vmatpush.bf16.msra.mxu0 %v441
  %459 = vmatpush.bf16.msra.mxu0 %v440
  %460 = vmatpush.bf16.msra.mxu0 %v439
  %461 = vmatpush.bf16.msra.mxu0 %v438
  %462 = vmatmul.bf16.gmra.mxu0 %v385
  %v463 = vpop.f32.mrf.mxu0
  %v464 = vadd.f32 %v404, %v463
  %v465 = vpop.f32.mrf.mxu0
  %466 = vdwg.mxu0
  %467 = vst [vmem:[%s7] sm:$0xff] %v464
  // Predicated region
  $region30: #{lenet5_forward.5} parent=0 // pred_check
    _
  $region31: #{lenet5_forward.5} parent=0 // pred_check_branch
    %469 = sbr.rel (0) target = $region33
  $region32: #{lenet5_forward.5} parent=0 // pred_region
    _
  $region33: #{lenet5_forward.5} parent=0 // pred_fallthru
    _
  // Predicated region
  $region34: #{lenet5_forward.5} parent=0 // pred_check
    _
  $region35: #{lenet5_forward.5} parent=0 // pred_check_branch
    %471 = sbr.rel (0) target = $region37
  $region36: #{lenet5_forward.5} parent=0 // pred_region
    _
  $region37: #{lenet5_forward.5} parent=0 // pred_fallthru
    _

</llo_original>
